<compile_context>
chip_gen: v7x
topology: tpu7x:2x2x1
jax: 0.10.0
libtpu: 0.0.40
codegen_flags: <defaults>
</compile_context>

<pallas_src>
import jax
import jax.numpy as jnp
from jax.experimental import pallas as pl
from jax.experimental.pallas import tpu as pltpu

# -------------------- model dimensions (small, forward-consistent) ----------
B, S, H, F, V, NUM_LABELS = 2, 8, 32, 64, 100, 2
LN_EPS = 1e-7


# ============================ fused Pallas kernel ============================

def fused_model_kernel(ids_ref, pos_ref, maskb_ref, emb_ref,
                       wqkv_ref, wo_ref, w1_ref, b1_ref, w2_ref, b2_ref,
                       g1_ref, be1_ref, g2_ref, be2_ref,
                       wout_ref, bout_ref,
                       logits_ref, loss_ref):
    f32 = jnp.float32

    # ---- embedding lookup: one-hot MXU gather (V x H table resident in VMEM)
    ids = ids_ref[...]                                                # [B*S,1] int32
    vocab_iota = jax.lax.broadcasted_iota(jnp.int32, (B * S, V), 1)
    onehot = (vocab_iota == ids).astype(f32)                          # [B*S,V]
    x2d = jnp.dot(onehot, emb_ref[...], preferred_element_type=f32)   # [B*S,H]

    def layernorm(v, g, b):                                           # g,b: [1,H]
        mu = jnp.mean(v, axis=-1, keepdims=True)
        var = jnp.mean((v - mu) ** 2, axis=-1, keepdims=True)
        return (v - mu) * jax.lax.rsqrt(var + LN_EPS) * g + b

    # ---- attention: fused QKV projection, 2-D MXU matmuls ----
    qkv = jnp.dot(x2d, wqkv_ref[...], preferred_element_type=f32)     # [B*S,3H]
    q = qkv[:, 0 * H:1 * H].reshape(B, S, H)
    k = qkv[:, 1 * H:2 * H].reshape(B, S, H)
    v = qkv[:, 2 * H:3 * H].reshape(B, S, H)

    scale = 1.0 / jnp.sqrt(f32(H))
    scores = jnp.einsum('bqd,bkd->bqk', q, k,
                        preferred_element_type=f32) * scale           # [B,S,S]
    scores = scores + maskb_ref[...]                                  # [B,1,S] pad bias

    m = jnp.max(scores, axis=-1, keepdims=True)
    e = jnp.exp(scores - m)
    p = e * pl.reciprocal(jnp.sum(e, axis=-1, keepdims=True), approx=True)

    attn = jnp.einsum('bqk,bkd->bqd', p, v, preferred_element_type=f32)
    attn2d = jnp.dot(attn.reshape(B * S, H), wo_ref[...],
                     preferred_element_type=f32)                      # [B*S,H]

    h1 = layernorm(x2d + attn2d, g1_ref[...], be1_ref[...])

    # ---- FFN ----
    ff = jnp.dot(h1, w1_ref[...], preferred_element_type=f32) + b1_ref[...]
    ff = jax.nn.gelu(ff, approximate=True)
    ff = jnp.dot(ff, w2_ref[...], preferred_element_type=f32) + b2_ref[...]
    h2 = layernorm(h1 + ff, g2_ref[...], be2_ref[...])                # [B*S,H]

    # ---- QA head: single [B*S,H] x [H,2] MXU dot (col 0 = start, col 1 = end)
    logits2d = (jnp.dot(h2, wout_ref[...], preferred_element_type=f32)
                + bout_ref[...])                                      # [B*S,2]
    logits3 = logits2d.reshape(B, S, NUM_LABELS)                      # free split on 8-boundary
    logits_ref[...] = logits3.astype(logits_ref.dtype)

    # ---- CrossEntropy(ignore_index=S) for start & end jointly ----
    tgt = jnp.clip(pos_ref[...], 0, S)                                # [B,1,2] int32
    mrow = jnp.max(logits3, axis=1, keepdims=True)                    # [B,1,2]
    lse = mrow + jnp.log(jnp.sum(jnp.exp(logits3 - mrow),
                                 axis=1, keepdims=True))              # [B,1,2]
    pos_iota = jax.lax.broadcasted_iota(jnp.int32, (B, S, NUM_LABELS), 1)
    gathered = jnp.sum(jnp.where(pos_iota == tgt, logits3, 0.0),
                       axis=1, keepdims=True)                         # [B,1,2]
    valid = (tgt != S).astype(f32)                                    # [B,1,2]
    nll = (lse - gathered) * valid
    # mean over valid batch entries per label; 0/0 -> NaN matches torch CE
    per_label = jnp.sum(nll, axis=0) / jnp.sum(valid, axis=0)         # [1,2]
    loss_ref[...] = 0.5 * jnp.sum(per_label, axis=-1, keepdims=True)  # [1,1]


# ============================ Python wrapper =================================

_VMEM = pl.BlockSpec(memory_space=pltpu.MemorySpace.VMEM)


def abhishek_forward(params, input_ids, attention_mask,
                     start_positions, end_positions):
    # Cheap data-prep glue (hoisted out of the kernel hot path).
    ids2d = input_ids.reshape(B * S, 1).astype(jnp.int32)
    mask_bias = ((attention_mask.astype(jnp.float32) - 1.0) * 1e9
                 ).reshape(B, 1, S)
    pos = jnp.stack([start_positions.reshape(B),
                     end_positions.reshape(B)],
                    axis=-1).reshape(B, 1, NUM_LABELS).astype(jnp.int32)

    flat_inputs = (ids2d, pos, mask_bias,
                   params['emb'], params['wqkv'], params['wo'],
                   params['w1'], params['b1'], params['w2'], params['b2'],
                   params['g1'], params['be1'], params['g2'], params['be2'],
                   params['wout_t'], params['b_out'])

    logits, loss = pl.pallas_call(
        fused_model_kernel,
        out_shape=(jax.ShapeDtypeStruct((B, S, NUM_LABELS), jnp.float32),
                   jax.ShapeDtypeStruct((1, 1), jnp.float32)),
        in_specs=[_VMEM] * len(flat_inputs),
        out_specs=(_VMEM, _VMEM),
    )(*flat_inputs)

    # split(1, dim=-1) + squeeze(-1) done in the wrapper (free XLA reshape).
    start_logits = logits[:, :, 0]
    end_logits = logits[:, :, 1]
    return start_logits, end_logits, loss[0, 0]


# ============================ parameter init =================================

def init_params(key):
    ks = jax.random.split(key, 8)
    scale = 0.02
    wq = scale * jax.random.normal(ks[0], (H, H), jnp.float32)
    wk = scale * jax.random.normal(ks[1], (H, H), jnp.float32)
    wv = scale * jax.random.normal(ks[2], (H, H), jnp.float32)
    w_out = scale * jax.random.normal(ks[7], (NUM_LABELS, H), jnp.float32)  # torch layout
    return {
        'emb': scale * jax.random.normal(ks[6], (V, H), jnp.float32),
        'wqkv': jnp.concatenate([wq, wk, wv], axis=1),        # fused [H,3H] QKV
        'wo': scale * jax.random.normal(ks[3], (H, H), jnp.float32),
        'w1': scale * jax.random.normal(ks[4], (H, F), jnp.float32),
        'b1': jnp.zeros((1, F), jnp.float32),
        'w2': scale * jax.random.normal(ks[5], (F, H), jnp.float32),
        'b2': jnp.zeros((1, H), jnp.float32),
        'g1': jnp.ones((1, H), jnp.float32),
        'be1': jnp.zeros((1, H), jnp.float32),
        'g2': jnp.ones((1, H), jnp.float32),
        'be2': jnp.zeros((1, H), jnp.float32),
        'wout_t': w_out.T,                                    # [H,2] for MXU head dot
        'b_out': jnp.zeros((1, NUM_LABELS), jnp.float32),
    }


# ================================= main ======================================

if __name__ == "__main__":
    key = jax.random.PRNGKey(0)
    k_par, k_ids, k_sp, k_ep = jax.random.split(key, 4)

    params = init_params(k_par)

    input_ids = jax.random.randint(k_ids, (B, S), 0, V, dtype=jnp.int32)
    attention_mask = jnp.concatenate(
        [jnp.ones((B, S - 2), jnp.float32), jnp.zeros((B, 2), jnp.float32)],
        axis=-1)                                                   # pad last 2 tokens
    start_positions = jax.random.randint(k_sp, (B,), 0, S, dtype=jnp.int32)
    end_positions = jax.random.randint(k_ep, (B,), 0, S, dtype=jnp.int32)

    start_logits, end_logits, loss = abhishek_forward(
        params, input_ids, attention_mask, start_positions, end_positions)

    jax.block_until_ready((start_logits, end_logits, loss))
    assert start_logits.shape == (B, S)
    assert end_logits.shape == (B, S)
    assert loss.shape == ()
    print("KERNEL_OK")
</pallas_src>

<mosaic_0001>
module attributes {stable_mosaic.version = 11 : i64} {
  func.func @fused_model_kernel(%arg0: memref<16x1xi32, #tpu.memory_space<vmem>>, %arg1: memref<2x1x2xi32, #tpu.memory_space<vmem>>, %arg2: memref<2x1x8xf32, #tpu.memory_space<vmem>>, %arg3: memref<100x32xf32, #tpu.memory_space<vmem>>, %arg4: memref<32x96xf32, #tpu.memory_space<vmem>>, %arg5: memref<32x32xf32, #tpu.memory_space<vmem>>, %arg6: memref<32x64xf32, #tpu.memory_space<vmem>>, %arg7: memref<1x64xf32, #tpu.memory_space<vmem>>, %arg8: memref<64x32xf32, #tpu.memory_space<vmem>>, %arg9: memref<1x32xf32, #tpu.memory_space<vmem>>, %arg10: memref<1x32xf32, #tpu.memory_space<vmem>>, %arg11: memref<1x32xf32, #tpu.memory_space<vmem>>, %arg12: memref<1x32xf32, #tpu.memory_space<vmem>>, %arg13: memref<1x32xf32, #tpu.memory_space<vmem>>, %arg14: memref<32x2xf32, #tpu.memory_space<vmem>>, %arg15: memref<1x2xf32, #tpu.memory_space<vmem>>, %arg16: memref<2x8x2xf32, #tpu.memory_space<vmem>>, %arg17: memref<1x1xf32, #tpu.memory_space<vmem>>) attributes {dimension_semantics = [], scalar_prefetch = 0 : i64, scratch_operands = 0 : i64, tpu.core_type = #tpu.core_type<tc>} {
    %c0 = arith.constant 0 : index
    %c0_0 = arith.constant 0 : index
    %0 = vector.load %arg0[%c0, %c0_0] : memref<16x1xi32, #tpu.memory_space<vmem>>, vector<16x1xi32>
    %1 = tpu.iota {dimensions = array<i32: 1>} : vector<16x100xi32>
    %2 = vector.broadcast %0 : vector<16x1xi32> to vector<16x100xi32>
    %3 = arith.cmpi eq, %1, %2 : vector<16x100xi32>
    %4 = arith.extui %3 : vector<16x100xi1> to vector<16x100xi32>
    %5 = arith.sitofp %4 : vector<16x100xi32> to vector<16x100xf32>
    %c0_1 = arith.constant 0 : index
    %c0_2 = arith.constant 0 : index
    %6 = vector.load %arg3[%c0_1, %c0_2] : memref<100x32xf32, #tpu.memory_space<vmem>>, vector<100x32xf32>
    %cst = arith.constant dense<0.000000e+00> : vector<16x32xf32>
    %7 = tpu.matmul %5, %6, %cst {dimension_numbers = #tpu.dot_dimension_numbers<[1], [0], [0], [1], [0, 0, 1, 1], [], []>} : vector<16x100xf32>, vector<100x32xf32>, vector<16x32xf32> -> vector<16x32xf32>
    %c0_3 = arith.constant 0 : index
    %c0_4 = arith.constant 0 : index
    %8 = vector.load %arg4[%c0_3, %c0_4] : memref<32x96xf32, #tpu.memory_space<vmem>>, vector<32x96xf32>
    %cst_5 = arith.constant dense<0.000000e+00> : vector<16x96xf32>
    %9 = tpu.matmul %7, %8, %cst_5 {dimension_numbers = #tpu.dot_dimension_numbers<[1], [0], [0], [1], [0, 0, 1, 1], [], []>} : vector<16x32xf32>, vector<32x96xf32>, vector<16x96xf32> -> vector<16x96xf32>
    %10 = vector.extract_strided_slice %9 {offsets = [0, 0], sizes = [16, 32], strides = [1, 1]} : vector<16x96xf32> to vector<16x32xf32>
    %11 = vector.shape_cast %10 : vector<16x32xf32> to vector<2x8x32xf32>
    %12 = vector.extract_strided_slice %9 {offsets = [0, 32], sizes = [16, 32], strides = [1, 1]} : vector<16x96xf32> to vector<16x32xf32>
    %13 = vector.shape_cast %12 : vector<16x32xf32> to vector<2x8x32xf32>
    %14 = vector.extract_strided_slice %9 {offsets = [0, 64], sizes = [16, 32], strides = [1, 1]} : vector<16x96xf32> to vector<16x32xf32>
    %15 = vector.shape_cast %14 : vector<16x32xf32> to vector<2x8x32xf32>
    %cst_6 = arith.constant 3.200000e+01 : f32
    %16 = math.sqrt %cst_6 : f32
    %cst_7 = arith.constant 1.000000e+00 : f32
    %17 = arith.divf %cst_7, %16 : f32
    "tpu.trace_start"() <{level = 10 : i32, message = "bqd,bkd->bqk"}> : () -> ()
    %cst_8 = arith.constant dense<0.000000e+00> : vector<2x8x8xf32>
    %18 = tpu.matmul %11, %13, %cst_8 {dimension_numbers = #tpu.dot_dimension_numbers<[2], [2], [1], [1], [0, 0, 0, 1, 1, 1], [0], [0]>} : vector<2x8x32xf32>, vector<2x8x32xf32>, vector<2x8x8xf32> -> vector<2x8x8xf32>
    "tpu.trace_stop"() : () -> ()
    %19 = vector.broadcast %17 : f32 to vector<2x8x8xf32>
    %20 = arith.mulf %18, %19 : vector<2x8x8xf32>
    %c0_9 = arith.constant 0 : index
    %c0_10 = arith.constant 0 : index
    %c0_11 = arith.constant 0 : index
    %21 = vector.load %arg2[%c0_9, %c0_10, %c0_11] : memref<2x1x8xf32, #tpu.memory_space<vmem>>, vector<2x1x8xf32>
    %22 = vector.broadcast %21 : vector<2x1x8xf32> to vector<2x8x8xf32>
    %23 = arith.addf %20, %22 : vector<2x8x8xf32>
    %cst_12 = arith.constant dense<0xFF800000> : vector<2x8xf32>
    %24 = vector.multi_reduction <maximumf>, %23, %cst_12 [2] : vector<2x8x8xf32> to vector<2x8xf32>
    %25 = vector.shape_cast %24 : vector<2x8xf32> to vector<2x8x1xf32>
    %26 = vector.broadcast %25 : vector<2x8x1xf32> to vector<2x8x8xf32>
    %27 = arith.subf %23, %26 : vector<2x8x8xf32>
    %28 = math.exp %27 : vector<2x8x8xf32>
    %cst_13 = arith.constant dense<0.000000e+00> : vector<2x8xf32>
    %29 = vector.multi_reduction <add>, %28, %cst_13 [2] : vector<2x8x8xf32> to vector<2x8xf32>
    %30 = vector.shape_cast %29 : vector<2x8xf32> to vector<2x8x1xf32>
    %31 = tpu.reciprocal %30 {approx = true} : vector<2x8x1xf32> -> vector<2x8x1xf32>
    %32 = vector.broadcast %31 : vector<2x8x1xf32> to vector<2x8x8xf32>
    %33 = arith.mulf %28, %32 : vector<2x8x8xf32>
    "tpu.trace_start"() <{level = 10 : i32, message = "bqk,bkd->bqd"}> : () -> ()
    %cst_14 = arith.constant dense<0.000000e+00> : vector<2x8x32xf32>
    %34 = tpu.matmul %33, %15, %cst_14 {dimension_numbers = #tpu.dot_dimension_numbers<[2], [1], [1], [2], [0, 0, 0, 1, 1, 2], [0], [0]>} : vector<2x8x8xf32>, vector<2x8x32xf32>, vector<2x8x32xf32> -> vector<2x8x32xf32>
    "tpu.trace_stop"() : () -> ()
    %35 = vector.shape_cast %34 : vector<2x8x32xf32> to vector<16x32xf32>
    %c0_15 = arith.constant 0 : index
    %c0_16 = arith.constant 0 : index
    %36 = vector.load %arg5[%c0_15, %c0_16] : memref<32x32xf32, #tpu.memory_space<vmem>>, vector<32x32xf32>
    %cst_17 = arith.constant dense<0.000000e+00> : vector<16x32xf32>
    %37 = tpu.matmul %35, %36, %cst_17 {dimension_numbers = #tpu.dot_dimension_numbers<[1], [0], [0], [1], [0, 0, 1, 1], [], []>} : vector<16x32xf32>, vector<32x32xf32>, vector<16x32xf32> -> vector<16x32xf32>
    %38 = arith.addf %7, %37 : vector<16x32xf32>
    %c0_18 = arith.constant 0 : index
    %c0_19 = arith.constant 0 : index
    %39 = vector.load %arg10[%c0_18, %c0_19] : memref<1x32xf32, #tpu.memory_space<vmem>>, vector<1x32xf32>
    %c0_20 = arith.constant 0 : index
    %c0_21 = arith.constant 0 : index
    %40 = vector.load %arg11[%c0_20, %c0_21] : memref<1x32xf32, #tpu.memory_space<vmem>>, vector<1x32xf32>
    %cst_22 = arith.constant dense<0.000000e+00> : vector<16xf32>
    %41 = vector.multi_reduction <add>, %38, %cst_22 [1] : vector<16x32xf32> to vector<16xf32>
    %42 = vector.shape_cast %41 : vector<16xf32> to vector<16x1xf32>
    %cst_23 = arith.constant 3.200000e+01 : f32
    %43 = vector.broadcast %cst_23 : f32 to vector<16x1xf32>
    %44 = arith.divf %42, %43 : vector<16x1xf32>
    %45 = vector.broadcast %44 : vector<16x1xf32> to vector<16x32xf32>
    %46 = arith.subf %38, %45 : vector<16x32xf32>
    %47 = arith.mulf %46, %46 : vector<16x32xf32>
    %cst_24 = arith.constant dense<0.000000e+00> : vector<16xf32>
    %48 = vector.multi_reduction <add>, %47, %cst_24 [1] : vector<16x32xf32> to vector<16xf32>
    %49 = vector.shape_cast %48 : vector<16xf32> to vector<16x1xf32>
    %cst_25 = arith.constant 3.200000e+01 : f32
    %50 = vector.broadcast %cst_25 : f32 to vector<16x1xf32>
    %51 = arith.divf %49, %50 : vector<16x1xf32>
    %52 = vector.broadcast %44 : vector<16x1xf32> to vector<16x32xf32>
    %53 = arith.subf %38, %52 : vector<16x32xf32>
    %cst_26 = arith.constant 1.000000e-07 : f32
    %54 = vector.broadcast %cst_26 : f32 to vector<16x1xf32>
    %55 = arith.addf %51, %54 : vector<16x1xf32>
    %56 = math.rsqrt %55 : vector<16x1xf32>
    %57 = vector.broadcast %56 : vector<16x1xf32> to vector<16x32xf32>
    %58 = arith.mulf %53, %57 : vector<16x32xf32>
    %59 = vector.broadcast %39 : vector<1x32xf32> to vector<16x32xf32>
    %60 = arith.mulf %58, %59 : vector<16x32xf32>
    %61 = vector.broadcast %40 : vector<1x32xf32> to vector<16x32xf32>
    %62 = arith.addf %60, %61 : vector<16x32xf32>
    %c0_27 = arith.constant 0 : index
    %c0_28 = arith.constant 0 : index
    %63 = vector.load %arg6[%c0_27, %c0_28] : memref<32x64xf32, #tpu.memory_space<vmem>>, vector<32x64xf32>
    %cst_29 = arith.constant dense<0.000000e+00> : vector<16x64xf32>
    %64 = tpu.matmul %62, %63, %cst_29 {dimension_numbers = #tpu.dot_dimension_numbers<[1], [0], [0], [1], [0, 0, 1, 1], [], []>} : vector<16x32xf32>, vector<32x64xf32>, vector<16x64xf32> -> vector<16x64xf32>
    %c0_30 = arith.constant 0 : index
    %c0_31 = arith.constant 0 : index
    %65 = vector.load %arg7[%c0_30, %c0_31] : memref<1x64xf32, #tpu.memory_space<vmem>>, vector<1x64xf32>
    %66 = vector.broadcast %65 : vector<1x64xf32> to vector<16x64xf32>
    %67 = arith.addf %64, %66 : vector<16x64xf32>
    %68 = arith.mulf %67, %67 : vector<16x64xf32>
    %69 = arith.mulf %67, %68 : vector<16x64xf32>
    %cst_32 = arith.constant 4.471500e-02 : f32
    %70 = vector.broadcast %cst_32 : f32 to vector<16x64xf32>
    %71 = arith.mulf %70, %69 : vector<16x64xf32>
    %72 = arith.addf %67, %71 : vector<16x64xf32>
    %cst_33 = arith.constant 0.797884583 : f32
    %73 = vector.broadcast %cst_33 : f32 to vector<16x64xf32>
    %74 = arith.mulf %73, %72 : vector<16x64xf32>
    %75 = math.tanh %74 : vector<16x64xf32>
    %cst_34 = arith.constant 1.000000e+00 : f32
    %76 = vector.broadcast %cst_34 : f32 to vector<16x64xf32>
    %77 = arith.addf %76, %75 : vector<16x64xf32>
    %cst_35 = arith.constant 5.000000e-01 : f32
    %78 = vector.broadcast %cst_35 : f32 to vector<16x64xf32>
    %79 = arith.mulf %78, %77 : vector<16x64xf32>
    %80 = arith.mulf %67, %79 : vector<16x64xf32>
    %c0_36 = arith.constant 0 : index
    %c0_37 = arith.constant 0 : index
    %81 = vector.load %arg8[%c0_36, %c0_37] : memref<64x32xf32, #tpu.memory_space<vmem>>, vector<64x32xf32>
    %cst_38 = arith.constant dense<0.000000e+00> : vector<16x32xf32>
    %82 = tpu.matmul %80, %81, %cst_38 {dimension_numbers = #tpu.dot_dimension_numbers<[1], [0], [0], [1], [0, 0, 1, 1], [], []>} : vector<16x64xf32>, vector<64x32xf32>, vector<16x32xf32> -> vector<16x32xf32>
    %c0_39 = arith.constant 0 : index
    %c0_40 = arith.constant 0 : index
    %83 = vector.load %arg9[%c0_39, %c0_40] : memref<1x32xf32, #tpu.memory_space<vmem>>, vector<1x32xf32>
    %84 = vector.broadcast %83 : vector<1x32xf32> to vector<16x32xf32>
    %85 = arith.addf %82, %84 : vector<16x32xf32>
    %86 = arith.addf %62, %85 : vector<16x32xf32>
    %c0_41 = arith.constant 0 : index
    %c0_42 = arith.constant 0 : index
    %87 = vector.load %arg12[%c0_41, %c0_42] : memref<1x32xf32, #tpu.memory_space<vmem>>, vector<1x32xf32>
    %c0_43 = arith.constant 0 : index
    %c0_44 = arith.constant 0 : index
    %88 = vector.load %arg13[%c0_43, %c0_44] : memref<1x32xf32, #tpu.memory_space<vmem>>, vector<1x32xf32>
    %cst_45 = arith.constant dense<0.000000e+00> : vector<16xf32>
    %89 = vector.multi_reduction <add>, %86, %cst_45 [1] : vector<16x32xf32> to vector<16xf32>
    %90 = vector.shape_cast %89 : vector<16xf32> to vector<16x1xf32>
    %cst_46 = arith.constant 3.200000e+01 : f32
    %91 = vector.broadcast %cst_46 : f32 to vector<16x1xf32>
    %92 = arith.divf %90, %91 : vector<16x1xf32>
    %93 = vector.broadcast %92 : vector<16x1xf32> to vector<16x32xf32>
    %94 = arith.subf %86, %93 : vector<16x32xf32>
    %95 = arith.mulf %94, %94 : vector<16x32xf32>
    %cst_47 = arith.constant dense<0.000000e+00> : vector<16xf32>
    %96 = vector.multi_reduction <add>, %95, %cst_47 [1] : vector<16x32xf32> to vector<16xf32>
    %97 = vector.shape_cast %96 : vector<16xf32> to vector<16x1xf32>
    %cst_48 = arith.constant 3.200000e+01 : f32
    %98 = vector.broadcast %cst_48 : f32 to vector<16x1xf32>
    %99 = arith.divf %97, %98 : vector<16x1xf32>
    %100 = vector.broadcast %92 : vector<16x1xf32> to vector<16x32xf32>
    %101 = arith.subf %86, %100 : vector<16x32xf32>
    %cst_49 = arith.constant 1.000000e-07 : f32
    %102 = vector.broadcast %cst_49 : f32 to vector<16x1xf32>
    %103 = arith.addf %99, %102 : vector<16x1xf32>
    %104 = math.rsqrt %103 : vector<16x1xf32>
    %105 = vector.broadcast %104 : vector<16x1xf32> to vector<16x32xf32>
    %106 = arith.mulf %101, %105 : vector<16x32xf32>
    %107 = vector.broadcast %87 : vector<1x32xf32> to vector<16x32xf32>
    %108 = arith.mulf %106, %107 : vector<16x32xf32>
    %109 = vector.broadcast %88 : vector<1x32xf32> to vector<16x32xf32>
    %110 = arith.addf %108, %109 : vector<16x32xf32>
    %c0_50 = arith.constant 0 : index
    %c0_51 = arith.constant 0 : index
    %111 = vector.load %arg14[%c0_50, %c0_51] : memref<32x2xf32, #tpu.memory_space<vmem>>, vector<32x2xf32>
    %cst_52 = arith.constant dense<0.000000e+00> : vector<16x2xf32>
    %112 = tpu.matmul %110, %111, %cst_52 {dimension_numbers = #tpu.dot_dimension_numbers<[1], [0], [0], [1], [0, 0, 1, 1], [], []>} : vector<16x32xf32>, vector<32x2xf32>, vector<16x2xf32> -> vector<16x2xf32>
    %c0_53 = arith.constant 0 : index
    %c0_54 = arith.constant 0 : index
    %113 = vector.load %arg15[%c0_53, %c0_54] : memref<1x2xf32, #tpu.memory_space<vmem>>, vector<1x2xf32>
    %114 = vector.broadcast %113 : vector<1x2xf32> to vector<16x2xf32>
    %115 = arith.addf %112, %114 : vector<16x2xf32>
    %116 = vector.shape_cast %115 : vector<16x2xf32> to vector<2x8x2xf32>
    %c0_55 = arith.constant 0 : index
    %c0_56 = arith.constant 0 : index
    %c0_57 = arith.constant 0 : index
    %117 = vector.load %arg16[%c0_55, %c0_56, %c0_57] : memref<2x8x2xf32, #tpu.memory_space<vmem>>, vector<2x8x2xf32>
    tpu.vector_store %arg16[%c0_55, %c0_56, %c0_57], %116 {strides = array<i32>} : memref<2x8x2xf32, #tpu.memory_space<vmem>>, vector<2x8x2xf32>,
    %c0_58 = arith.constant 0 : index
    %c0_59 = arith.constant 0 : index
    %c0_60 = arith.constant 0 : index
    %118 = vector.load %arg1[%c0_58, %c0_59, %c0_60] : memref<2x1x2xi32, #tpu.memory_space<vmem>>, vector<2x1x2xi32>
    %c0_i32 = arith.constant 0 : i32
    %c8_i32 = arith.constant 8 : i32
    %119 = vector.broadcast %c0_i32 : i32 to vector<2x1x2xi32>
    %120 = arith.maxsi %119, %118 : vector<2x1x2xi32>
    %121 = vector.broadcast %c8_i32 : i32 to vector<2x1x2xi32>
    %122 = arith.minsi %121, %120 : vector<2x1x2xi32>
    %cst_61 = arith.constant dense<0xFF800000> : vector<2x2xf32>
    %123 = vector.multi_reduction <maximumf>, %116, %cst_61 [1] : vector<2x8x2xf32> to vector<2x2xf32>
    %124 = vector.shape_cast %123 : vector<2x2xf32> to vector<2x1x2xf32>
    %125 = vector.broadcast %124 : vector<2x1x2xf32> to vector<2x8x2xf32>
    %126 = arith.subf %116, %125 : vector<2x8x2xf32>
    %127 = math.exp %126 : vector<2x8x2xf32>
    %cst_62 = arith.constant dense<0.000000e+00> : vector<2x2xf32>
    %128 = vector.multi_reduction <add>, %127, %cst_62 [1] : vector<2x8x2xf32> to vector<2x2xf32>
    %129 = vector.shape_cast %128 : vector<2x2xf32> to vector<2x1x2xf32>
    %130 = math.log %129 : vector<2x1x2xf32>
    %131 = arith.addf %124, %130 : vector<2x1x2xf32>
    %132 = tpu.iota {dimensions = array<i32: 1>} : vector<2x8x2xi32>
    %133 = vector.broadcast %122 : vector<2x1x2xi32> to vector<2x8x2xi32>
    %134 = arith.cmpi eq, %132, %133 : vector<2x8x2xi32>
    %cst_63 = arith.constant 0.000000e+00 : f32
    %135 = vector.broadcast %cst_63 : f32 to vector<2x8x2xf32>
    %136 = arith.select %134, %116, %135 : vector<2x8x2xi1>, vector<2x8x2xf32>
    %cst_64 = arith.constant dense<0.000000e+00> : vector<2x2xf32>
    %137 = vector.multi_reduction <add>, %136, %cst_64 [1] : vector<2x8x2xf32> to vector<2x2xf32>
    %138 = vector.shape_cast %137 : vector<2x2xf32> to vector<2x1x2xf32>
    %c8_i32_65 = arith.constant 8 : i32
    %139 = vector.broadcast %c8_i32_65 : i32 to vector<2x1x2xi32>
    %140 = arith.cmpi ne, %122, %139 : vector<2x1x2xi32>
    %141 = arith.extui %140 : vector<2x1x2xi1> to vector<2x1x2xi32>
    %142 = arith.sitofp %141 : vector<2x1x2xi32> to vector<2x1x2xf32>
    %143 = arith.subf %131, %138 : vector<2x1x2xf32>
    %144 = arith.mulf %143, %142 : vector<2x1x2xf32>
    %cst_66 = arith.constant dense<0.000000e+00> : vector<1x2xf32>
    %145 = vector.multi_reduction <add>, %144, %cst_66 [0] : vector<2x1x2xf32> to vector<1x2xf32>
    %cst_67 = arith.constant dense<0.000000e+00> : vector<1x2xf32>
    %146 = vector.multi_reduction <add>, %142, %cst_67 [0] : vector<2x1x2xf32> to vector<1x2xf32>
    %147 = arith.divf %145, %146 : vector<1x2xf32>
    %cst_68 = arith.constant dense<0.000000e+00> : vector<1xf32>
    %148 = vector.multi_reduction <add>, %147, %cst_68 [1] : vector<1x2xf32> to vector<1xf32>
    %149 = vector.shape_cast %148 : vector<1xf32> to vector<1x1xf32>
    %cst_69 = arith.constant 5.000000e-01 : f32
    %150 = vector.broadcast %cst_69 : f32 to vector<1x1xf32>
    %151 = arith.mulf %150, %149 : vector<1x1xf32>
    %c0_70 = arith.constant 0 : index
    %c0_71 = arith.constant 0 : index
    %152 = vector.load %arg17[%c0_70, %c0_71] : memref<1x1xf32, #tpu.memory_space<vmem>>, vector<1x1xf32>
    tpu.vector_store %arg17[%c0_70, %c0_71], %151 {strides = array<i32>} : memref<1x1xf32, #tpu.memory_space<vmem>>, vector<1x1xf32>,
    return
  }
}

</mosaic_0001>

<llo_original>
// kernel: tpu_custom_call.1
$region0: #{tpu_custom_call.1}
  #allocation0 [shape = 'u32[]', space=smem, size = 0x4, offset = 0x4, fixed_abs, tag = 'smem constant byte address 0x4 - core index']
  #allocation1 [shape = 'u32[144,128]{1,0:T(1,128)}', space=vmem, size = 0x12000, scoped, tag = 'internal scratch']
  %s0 = inlined_call_operand.vmem [shape: s32[16,1], index: 0, kind: input, shape index: {}]
  %s1 = inlined_call_operand.vmem [shape: s32[2,1,2], index: 1, kind: input, shape index: {}]
  %s2 = inlined_call_operand.vmem [shape: f32[2,1,8], index: 2, kind: input, shape index: {}]
  %s3 = inlined_call_operand.vmem [shape: f32[100,32], index: 3, kind: input, shape index: {}]
  %s4 = inlined_call_operand.vmem [shape: f32[32,96], index: 4, kind: input, shape index: {}]
  %s5 = inlined_call_operand.vmem [shape: f32[32,32], index: 5, kind: input, shape index: {}]
  %s6 = inlined_call_operand.vmem [shape: f32[32,64], index: 6, kind: input, shape index: {}]
  %s7 = inlined_call_operand.vmem [shape: f32[1,64], index: 7, kind: input, shape index: {}]
  %s8 = inlined_call_operand.vmem [shape: f32[64,32], index: 8, kind: input, shape index: {}]
  %s9 = inlined_call_operand.vmem [shape: f32[1,32], index: 9, kind: input, shape index: {}]
  %s10 = inlined_call_operand.vmem [shape: f32[1,32], index: 10, kind: input, shape index: {}]
  %s11 = inlined_call_operand.vmem [shape: f32[1,32], index: 11, kind: input, shape index: {}]
  %s12 = inlined_call_operand.vmem [shape: f32[1,32], index: 12, kind: input, shape index: {}]
  %s13 = inlined_call_operand.vmem [shape: f32[1,32], index: 13, kind: input, shape index: {}]
  %s14 = inlined_call_operand.vmem [shape: f32[32,2], index: 14, kind: input, shape index: {}]
  %s15 = inlined_call_operand.vmem [shape: f32[1,2], index: 15, kind: input, shape index: {}]
  %s16 = inlined_call_operand.vmem [shape: f32[2,8,2], index: 16, kind: output, shape index: {0}]
  %s17 = inlined_call_operand.hbm [shape: f32[1,1], index: 17, kind: output, shape index: {1}]
  %18 = xla_tuple %s16, %s17
  %s19 = sld [smem:[#allocation0]]
  $region82: #{tpu_custom_call.1} parent=0
    _
  %s21 = ssub.s32 1, %s19
  %s22 = scalar_select 0, %s21, %s19
  $region1: #{tpu_custom_call.1} parent=0
    #allocation2 [shape = 'u8[512]{0}', space=vmem, size = 0x400, scoped, tag = 'output window, operand 1, single buffered']
    #allocation3 [shape = 's32[1]{0}', space=sflag, size = 0x4, scoped, tag = 'scoped memory for tpu_custom_call.1']
    %23 = vsyncpa [#allocation3], 0
    // Predicated region
    $region2: #{tpu_custom_call.1} parent=1 // pred_check
      _
    $region3: #{tpu_custom_call.1} parent=1 // pred_check_branch
      %25 = sbr.rel (0) target = $region5
    $region4: #{tpu_custom_call.1} parent=1 // pred_region
      _
    $region5: #{tpu_custom_call.1} parent=1 // pred_fallthru
      _
    // Predicated region
    $region6: #{tpu_custom_call.1} parent=1 // pred_check
      _
    $region7: #{tpu_custom_call.1} parent=1 // pred_check_branch
      %27 = sbr.rel (0) target = $region9
    $region8: #{tpu_custom_call.1} parent=1 // pred_region
      _
    $region9: #{tpu_custom_call.1} parent=1 // pred_fallthru
      _
    // Predicated region
    $region10: #{tpu_custom_call.1} parent=1 // pred_check
      _
    $region11: #{tpu_custom_call.1} parent=1 // pred_check_branch
      %29 = sbr.rel (0) target = $region13
    $region12: #{tpu_custom_call.1} parent=1 // pred_region
      _
    $region13: #{tpu_custom_call.1} parent=1 // pred_fallthru
      _
    // Predicated region
    $region14: #{tpu_custom_call.1} parent=1 // pred_check
      _
    $region15: #{tpu_custom_call.1} parent=1 // pred_check_branch
      %31 = sbr.rel (0) target = $region17
    $region16: #{tpu_custom_call.1} parent=1 // pred_region
      _
    $region17: #{tpu_custom_call.1} parent=1 // pred_fallthru
      _
    // Predicated region
    $region18: #{tpu_custom_call.1} parent=1 // pred_check
      _
    $region19: #{tpu_custom_call.1} parent=1 // pred_check_branch
      %33 = sbr.rel (0) target = $region21
    $region20: #{tpu_custom_call.1} parent=1 // pred_region
      _
    $region21: #{tpu_custom_call.1} parent=1 // pred_fallthru
      _
    // Predicated region
    $region22: #{tpu_custom_call.1} parent=1 // pred_check
      _
    $region23: #{tpu_custom_call.1} parent=1 // pred_check_branch
      %35 = sbr.rel (0) target = $region25
    $region24: #{tpu_custom_call.1} parent=1 // pred_region
      _
    $region25: #{tpu_custom_call.1} parent=1 // pred_fallthru
      _
    // Predicated region
    $region26: #{tpu_custom_call.1} parent=1 // pred_check
      _
    $region27: #{tpu_custom_call.1} parent=1 // pred_check_branch
      %37 = sbr.rel (0) target = $region29
    $region28: #{tpu_custom_call.1} parent=1 // pred_region
      _
    $region29: #{tpu_custom_call.1} parent=1 // pred_fallthru
      _
    // Predicated region
    $region30: #{tpu_custom_call.1} parent=1 // pred_check
      _
    $region31: #{tpu_custom_call.1} parent=1 // pred_check_branch
      %39 = sbr.rel (0) target = $region33
    $region32: #{tpu_custom_call.1} parent=1 // pred_region
      _
    $region33: #{tpu_custom_call.1} parent=1 // pred_fallthru
      _
    // Predicated region
    $region34: #{tpu_custom_call.1} parent=1 // pred_check
      _
    $region35: #{tpu_custom_call.1} parent=1 // pred_check_branch
      %41 = sbr.rel (0) target = $region37
    $region36: #{tpu_custom_call.1} parent=1 // pred_region
      _
    $region37: #{tpu_custom_call.1} parent=1 // pred_fallthru
      _
    // Predicated region
    $region38: #{tpu_custom_call.1} parent=1 // pred_check
      _
    $region39: #{tpu_custom_call.1} parent=1 // pred_check_branch
      %43 = sbr.rel (0) target = $region41
    $region40: #{tpu_custom_call.1} parent=1 // pred_region
      _
    $region41: #{tpu_custom_call.1} parent=1 // pred_fallthru
      _
    // Predicated region
    $region42: #{tpu_custom_call.1} parent=1 // pred_check
      _
    $region43: #{tpu_custom_call.1} parent=1 // pred_check_branch
      %45 = sbr.rel (0) target = $region45
    $region44: #{tpu_custom_call.1} parent=1 // pred_region
      _
    $region45: #{tpu_custom_call.1} parent=1 // pred_fallthru
      _
    // Predicated region
    $region46: #{tpu_custom_call.1} parent=1 // pred_check
      _
    $region47: #{tpu_custom_call.1} parent=1 // pred_check_branch
      %47 = sbr.rel (0) target = $region49
    $region48: #{tpu_custom_call.1} parent=1 // pred_region
      _
    $region49: #{tpu_custom_call.1} parent=1 // pred_fallthru
      _
    // Predicated region
    $region50: #{tpu_custom_call.1} parent=1 // pred_check
      _
    $region51: #{tpu_custom_call.1} parent=1 // pred_check_branch
      %49 = sbr.rel (0) target = $region53
    $region52: #{tpu_custom_call.1} parent=1 // pred_region
      _
    $region53: #{tpu_custom_call.1} parent=1 // pred_fallthru
      _
    // Predicated region
    $region54: #{tpu_custom_call.1} parent=1 // pred_check
      _
    $region55: #{tpu_custom_call.1} parent=1 // pred_check_branch
      %51 = sbr.rel (0) target = $region57
    $region56: #{tpu_custom_call.1} parent=1 // pred_region
      _
    $region57: #{tpu_custom_call.1} parent=1 // pred_fallthru
      _
    // Predicated region
    $region58: #{tpu_custom_call.1} parent=1 // pred_check
      _
    $region59: #{tpu_custom_call.1} parent=1 // pred_check_branch
      %53 = sbr.rel (0) target = $region61
    $region60: #{tpu_custom_call.1} parent=1 // pred_region
      _
    $region61: #{tpu_custom_call.1} parent=1 // pred_fallthru
      _
    // Predicated region
    $region62: #{tpu_custom_call.1} parent=1 // pred_check
      _
    $region63: #{tpu_custom_call.1} parent=1 // pred_check_branch
      %55 = sbr.rel (0) target = $region65
    $region64: #{tpu_custom_call.1} parent=1 // pred_region
      _
    $region65: #{tpu_custom_call.1} parent=1 // pred_fallthru
      _
    %v56 = vld [vmem:[%s0] sm:$0xff]
    %v57 = vld [vmem:[%s0 + $0x8] sm:$0xff]
    %v58 = vlaneseq
    %v59 = vand.u32 %v58, 127
    %60 = vset.pattern.permute.xlu0 0
    %61 = vperm.xlu0 %60, %v56
    %v62 = vpop.permute.xlu0 %61
    %63 = vset.pattern.permute.xlu0 0
    %64 = vperm.xlu0 %63, %v57
    %v65 = vpop.permute.xlu0 %64
    %vm66 = vcmp.eq.s32.totalorder %v59, %v62
    %vm67 = vcmp.eq.s32.totalorder %v59, %v65
    %v68 = vsel %vm66, 1, 0
    %v69 = vsel %vm67, 1, 0
    %v70 = vcvt.s32.f32 %v68
    %v71 = vcvt.s32.f32 %v69
    %v72 = vld [vmem:[%s3] sm:$0xff]
    %v73 = vld [vmem:[%s3 + $0x8] sm:$0xff]
    %v74 = vld [vmem:[%s3 + $0x10] sm:$0xff]
    %v75 = vld [vmem:[%s3 + $0x18] sm:$0xff]
    %v76 = vld [vmem:[%s3 + $0x20] sm:$0xff]
    %v77 = vld [vmem:[%s3 + $0x28] sm:$0xff]
    %v78 = vld [vmem:[%s3 + $0x30] sm:$0xff]
    %v79 = vld [vmem:[%s3 + $0x38] sm:$0xff]
    %v80 = vld [vmem:[%s3 + $0x40] sm:$0xff]
    %v81 = vld [vmem:[%s3 + $0x48] sm:$0xff]
    %v82 = vld [vmem:[%s3 + $0x50] sm:$0xff]
    %v83 = vld [vmem:[%s3 + $0x58] sm:$0xff]
    %v84 = vld [vmem:[%s3 + $0x60] sm:$0xf]
    %vm85 = vcmask 818176
    %v87 = vsel %vm85, %v70, 0
    %v90 = vsel %vm85, %v71, 0
    %vm92 = vcmask 1043456
    %v94 = vsel %vm92, %v84, 0
    %96 = vmatprep.subr.mxu0 0.0
    %97 = vmatpush1.msra.mxu0 %v72
    %98 = vmatprep.subr.mxu0 0.0
    %99 = vmatpush1.msra.mxu0 %v73
    %100 = vmatprep.subr.mxu0 0.0
    %101 = vmatpush1.msra.mxu0 %v74
    %102 = vmatprep.subr.mxu0 0.0
    %103 = vmatpush1.msra.mxu0 %v75
    %104 = vmatprep.subr.mxu0 0.0
    %105 = vmatpush1.msra.mxu0 %v76
    %106 = vmatprep.subr.mxu0 0.0
    %107 = vmatpush1.msra.mxu0 %v77
    %108 = vmatprep.subr.mxu0 0.0
    %109 = vmatpush1.msra.mxu0 %v78
    %110 = vmatprep.subr.mxu0 0.0
    %111 = vmatpush1.msra.mxu0 %v79
    %112 = vmatprep.subr.mxu0 0.0
    %113 = vmatpush1.msra.mxu0 %v80
    %114 = vmatprep.subr.mxu0 0.0
    %115 = vmatpush1.msra.mxu0 %v81
    %116 = vmatprep.subr.mxu0 0.0
    %117 = vmatpush1.msra.mxu0 %v82
    %118 = vmatprep.subr.mxu0 0.0
    %119 = vmatpush1.msra.mxu0 %v83
    %120 = vmatprep.subr.mxu0 0.0
    %121 = vmatpush1.msra.mxu0 %v94
    %122 = vmatprep.subr.mxu0 0.0
    %123 = vmatpush1.msra.mxu0 0.0
    %124 = vmatprep.subr.mxu0 0.0
    %125 = vmatpush1.msra.mxu0 0.0
    %126 = vmatprep.subr.mxu0 0.0
    %127 = vmatpush1.msra.mxu0 0.0
    %128 = vmatprep.subr.mxu0 0.0
    %129 = vmatpush1.msra.mxu0 0.0
    %130 = vmatprep.subr.mxu0 0.0
    %131 = vmatpush1.msra.mxu0 0.0
    %132 = vmatprep.subr.mxu0 0.0
    %133 = vmatpush1.msra.mxu0 0.0
    %134 = vmatprep.subr.mxu0 0.0
    %135 = vmatpush1.msra.mxu0 0.0
    %136 = vmatprep.subr.mxu0 0.0
    %137 = vmatpush1.msra.mxu0 0.0
    %138 = vmatprep.subr.mxu0 0.0
    %139 = vmatpush1.msra.mxu0 0.0
    %140 = vmatprep.subr.mxu0 0.0
    %141 = vmatpush1.msra.mxu0 0.0
    %142 = vmatprep.subr.mxu0 0.0
    %143 = vmatpush1.msra.mxu0 0.0
    %144 = vmatprep.subr.mxu0 0.0
    %145 = vmatpush1.msra.mxu0 0.0
    %146 = vmatprep.subr.mxu0 0.0
    %147 = vmatpush1.msra.mxu0 0.0
    %148 = vmatprep.subr.mxu0 0.0
    %149 = vmatpush1.msra.mxu0 0.0
    %150 = vmatprep.subr.mxu0 0.0
    %151 = vmatpush1.msra.mxu0 0.0
    %152 = vmatprep.subr.mxu0 0.0
    %153 = vmatpush1.msra.mxu0 0.0
    %154 = vmatprep.subr.mxu0 0.0
    %155 = vmatpush1.msra.mxu0 0.0
    %156 = vmatprep.subr.mxu0 0.0
    %157 = vmatpush1.msra.mxu0 0.0
    %158 = vmatprep.subr.mxu0 0.0
    %159 = vmatpush1.msra.mxu0 0.0
    %160 = vmatprep.mubr.f32.mxu0 0.0
    %161 = vmatmul.mubr.f32.gmra.mrb[0].mxu0 %v87
    %v162 = vpop.f32.mrb[0].mxu0
    %v163 = vadd.f32 0.0, %v162
    %v164 = vpop.f32.mrb[0].mxu0
    %165 = vmatprep.mubr.f32.mxu0 0.0
    %166 = vmatmul.mubr.f32.gmra.mrb[0].mxu0 %v90
    %v167 = vpop.f32.mrb[0].mxu0
    %v168 = vadd.f32 0.0, %v167
    %v169 = vpop.f32.mrb[0].mxu0
    %170 = vdwg.mxu0
    %v171 = vld [vmem:[%s4] sm:$0xff]
    %v172 = vld [vmem:[%s4 + $0x8] sm:$0xff]
    %v173 = vld [vmem:[%s4 + $0x10] sm:$0xff]
    %v174 = vld [vmem:[%s4 + $0x18] sm:$0xff]
    %vm175 = vcmask 261120
    %v177 = vsel %vm175, %v163, 0
    %v180 = vsel %vm175, %v168, 0
    %182 = vmatprep.subr.mxu0 0.0
    %183 = vmatpush1.msra.mxu0 %v171
    %184 = vmatprep.subr.mxu0 0.0
    %185 = vmatpush1.msra.mxu0 %v172
    %186 = vmatprep.subr.mxu0 0.0
    %187 = vmatpush1.msra.mxu0 %v173
    %188 = vmatprep.subr.mxu0 0.0
    %189 = vmatpush1.msra.mxu0 %v174
    %190 = vmatprep.subr.mxu0 0.0
    %191 = vmatpush1.msra.mxu0 0.0
    %192 = vmatprep.subr.mxu0 0.0
    %193 = vmatpush1.msra.mxu0 0.0
    %194 = vmatprep.subr.mxu0 0.0
    %195 = vmatpush1.msra.mxu0 0.0
    %196 = vmatprep.subr.mxu0 0.0
    %197 = vmatpush1.msra.mxu0 0.0
    %198 = vmatprep.subr.mxu0 0.0
    %199 = vmatpush1.msra.mxu0 0.0
    %200 = vmatprep.subr.mxu0 0.0
    %201 = vmatpush1.msra.mxu0 0.0
    %202 = vmatprep.subr.mxu0 0.0
    %203 = vmatpush1.msra.mxu0 0.0
    %204 = vmatprep.subr.mxu0 0.0
    %205 = vmatpush1.msra.mxu0 0.0
    %206 = vmatprep.subr.mxu0 0.0
    %207 = vmatpush1.msra.mxu0 0.0
    %208 = vmatprep.subr.mxu0 0.0
    %209 = vmatpush1.msra.mxu0 0.0
    %210 = vmatprep.subr.mxu0 0.0
    %211 = vmatpush1.msra.mxu0 0.0
    %212 = vmatprep.subr.mxu0 0.0
    %213 = vmatpush1.msra.mxu0 0.0
    %214 = vmatprep.subr.mxu0 0.0
    %215 = vmatpush1.msra.mxu0 0.0
    %216 = vmatprep.subr.mxu0 0.0
    %217 = vmatpush1.msra.mxu0 0.0
    %218 = vmatprep.subr.mxu0 0.0
    %219 = vmatpush1.msra.mxu0 0.0
    %220 = vmatprep.subr.mxu0 0.0
    %221 = vmatpush1.msra.mxu0 0.0
    %222 = vmatprep.subr.mxu0 0.0
    %223 = vmatpush1.msra.mxu0 0.0
    %224 = vmatprep.subr.mxu0 0.0
    %225 = vmatpush1.msra.mxu0 0.0
    %226 = vmatprep.subr.mxu0 0.0
    %227 = vmatpush1.msra.mxu0 0.0
    %228 = vmatprep.subr.mxu0 0.0
    %229 = vmatpush1.msra.mxu0 0.0
    %230 = vmatprep.subr.mxu0 0.0
    %231 = vmatpush1.msra.mxu0 0.0
    %232 = vmatprep.subr.mxu0 0.0
    %233 = vmatpush1.msra.mxu0 0.0
    %234 = vmatprep.subr.mxu0 0.0
    %235 = vmatpush1.msra.mxu0 0.0
    %236 = vmatprep.subr.mxu0 0.0
    %237 = vmatpush1.msra.mxu0 0.0
    %238 = vmatprep.subr.mxu0 0.0
    %239 = vmatpush1.msra.mxu0 0.0
    %240 = vmatprep.subr.mxu0 0.0
    %241 = vmatpush1.msra.mxu0 0.0
    %242 = vmatprep.subr.mxu0 0.0
    %243 = vmatpush1.msra.mxu0 0.0
    %244 = vmatprep.subr.mxu0 0.0
    %245 = vmatpush1.msra.mxu0 0.0
    %246 = vmatprep.mubr.f32.mxu0 0.0
    %247 = vmatmul.mubr.f32.gmra.mrb[0].mxu0 %v177
    %v248 = vpop.f32.mrb[0].mxu0
    %v249 = vadd.f32 0.0, %v248
    %v250 = vpop.f32.mrb[0].mxu0
    %251 = vmatprep.mubr.f32.mxu0 0.0
    %252 = vmatmul.mubr.f32.gmra.mrb[0].mxu0 %v180
    %v253 = vpop.f32.mrb[0].mxu0
    %v254 = vadd.f32 0.0, %v253
    %v255 = vpop.f32.mrb[0].mxu0
    %256 = vdwg.mxu0
    %258 = vrot.lane.b32.xlu0 %v249, 96
    %v259 = vpop.permute.xlu0 %258
    %v260 = vsel %vm175, %v249, 0
    %v262 = vsel %vm175, %v259, 0
    %264 = vmatprep.subr.mxu0 0.0
    %265 = vmatpush1.xpose.msra.mxu0 %v262
    %266 = vmatprep.subr.mxu0 0.0
    %267 = vmatpush1.xpose.msra.mxu0 0.0
    %268 = vmatprep.subr.mxu0 0.0
    %269 = vmatpush1.xpose.msra.mxu0 0.0
    %270 = vmatprep.subr.mxu0 0.0
    %271 = vmatpush1.xpose.msra.mxu0 0.0
    %272 = vmatprep.subr.mxu0 0.0
    %273 = vmatpush1.xpose.msra.mxu0 0.0
    %274 = vmatprep.subr.mxu0 0.0
    %275 = vmatpush1.xpose.msra.mxu0 0.0
    %276 = vmatprep.subr.mxu0 0.0
    %277 = vmatpush1.xpose.msra.mxu0 0.0
    %278 = vmatprep.subr.mxu0 0.0
    %279 = vmatpush1.xpose.msra.mxu0 0.0
    %280 = vmatprep.subr.mxu0 0.0
    %281 = vmatpush1.xpose.msra.mxu0 0.0
    %282 = vmatprep.subr.mxu0 0.0
    %283 = vmatpush1.xpose.msra.mxu0 0.0
    %284 = vmatprep.subr.mxu0 0.0
    %285 = vmatpush1.xpose.msra.mxu0 0.0
    %286 = vmatprep.subr.mxu0 0.0
    %287 = vmatpush1.xpose.msra.mxu0 0.0
    %288 = vmatprep.subr.mxu0 0.0
    %289 = vmatpush1.xpose.msra.mxu0 0.0
    %290 = vmatprep.subr.mxu0 0.0
    %291 = vmatpush1.xpose.msra.mxu0 0.0
    %292 = vmatprep.subr.mxu0 0.0
    %293 = vmatpush1.xpose.msra.mxu0 0.0
    %294 = vmatprep.subr.mxu0 0.0
    %295 = vmatpush1.xpose.msra.mxu0 0.0
    %296 = vmatprep.subr.mxu0 0.0
    %297 = vmatpush1.xpose.msra.mxu0 0.0
    %298 = vmatprep.subr.mxu0 0.0
    %299 = vmatpush1.xpose.msra.mxu0 0.0
    %300 = vmatprep.subr.mxu0 0.0
    %301 = vmatpush1.xpose.msra.mxu0 0.0
    %302 = vmatprep.subr.mxu0 0.0
    %303 = vmatpush1.xpose.msra.mxu0 0.0
    %304 = vmatprep.subr.mxu0 0.0
    %305 = vmatpush1.xpose.msra.mxu0 0.0
    %306 = vmatprep.subr.mxu0 0.0
    %307 = vmatpush1.xpose.msra.mxu0 0.0
    %308 = vmatprep.subr.mxu0 0.0
    %309 = vmatpush1.xpose.msra.mxu0 0.0
    %310 = vmatprep.subr.mxu0 0.0
    %311 = vmatpush1.xpose.msra.mxu0 0.0
    %312 = vmatprep.subr.mxu0 0.0
    %313 = vmatpush1.xpose.msra.mxu0 0.0
    %314 = vmatprep.subr.mxu0 0.0
    %315 = vmatpush1.xpose.msra.mxu0 0.0
    %316 = vmatprep.subr.mxu0 0.0
    %317 = vmatpush1.xpose.msra.mxu0 0.0
    %318 = vmatprep.subr.mxu0 0.0
    %319 = vmatpush1.xpose.msra.mxu0 0.0
    %320 = vmatprep.subr.mxu0 0.0
    %321 = vmatpush1.xpose.msra.mxu0 0.0
    %322 = vmatprep.subr.mxu0 0.0
    %323 = vmatpush1.xpose.msra.mxu0 0.0
    %324 = vmatprep.subr.mxu0 0.0
    %325 = vmatpush1.xpose.msra.mxu0 0.0
    %326 = vmatprep.subr.mxu0 0.0
    %327 = vmatpush1.xpose.msra.mxu0 0.0
    %328 = vmatprep.mubr.f32.mxu0 0.0
    %329 = vmatmul.mubr.f32.gmra.mrb[0].mxu0 %v260
    %v330 = vpop.f32.mrb[0].mxu0
    %v331 = vadd.f32 0.0, %v330
    %v332 = vpop.f32.mrb[0].mxu0
    %333 = vdwg.mxu0
    %335 = vrot.lane.b32.xlu0 %v254, 96
    %v336 = vpop.permute.xlu0 %335
    %v337 = vsel %vm175, %v254, 0
    %v339 = vsel %vm175, %v336, 0
    %341 = vmatprep.subr.mxu0 0.0
    %342 = vmatpush1.xpose.msra.mxu0 %v339
    %343 = vmatprep.subr.mxu0 0.0
    %344 = vmatpush1.xpose.msra.mxu0 0.0
    %345 = vmatprep.subr.mxu0 0.0
    %346 = vmatpush1.xpose.msra.mxu0 0.0
    %347 = vmatprep.subr.mxu0 0.0
    %348 = vmatpush1.xpose.msra.mxu0 0.0
    %349 = vmatprep.subr.mxu0 0.0
    %350 = vmatpush1.xpose.msra.mxu0 0.0
    %351 = vmatprep.subr.mxu0 0.0
    %352 = vmatpush1.xpose.msra.mxu0 0.0
    %353 = vmatprep.subr.mxu0 0.0
    %354 = vmatpush1.xpose.msra.mxu0 0.0
    %355 = vmatprep.subr.mxu0 0.0
    %356 = vmatpush1.xpose.msra.mxu0 0.0
    %357 = vmatprep.subr.mxu0 0.0
    %358 = vmatpush1.xpose.msra.mxu0 0.0
    %359 = vmatprep.subr.mxu0 0.0
    %360 = vmatpush1.xpose.msra.mxu0 0.0
    %361 = vmatprep.subr.mxu0 0.0
    %362 = vmatpush1.xpose.msra.mxu0 0.0
    %363 = vmatprep.subr.mxu0 0.0
    %364 = vmatpush1.xpose.msra.mxu0 0.0
    %365 = vmatprep.subr.mxu0 0.0
    %366 = vmatpush1.xpose.msra.mxu0 0.0
    %367 = vmatprep.subr.mxu0 0.0
    %368 = vmatpush1.xpose.msra.mxu0 0.0
    %369 = vmatprep.subr.mxu0 0.0
    %370 = vmatpush1.xpose.msra.mxu0 0.0
    %371 = vmatprep.subr.mxu0 0.0
    %372 = vmatpush1.xpose.msra.mxu0 0.0
    %373 = vmatprep.subr.mxu0 0.0
    %374 = vmatpush1.xpose.msra.mxu0 0.0
    %375 = vmatprep.subr.mxu0 0.0
    %376 = vmatpush1.xpose.msra.mxu0 0.0
    %377 = vmatprep.subr.mxu0 0.0
    %378 = vmatpush1.xpose.msra.mxu0 0.0
    %379 = vmatprep.subr.mxu0 0.0
    %380 = vmatpush1.xpose.msra.mxu0 0.0
    %381 = vmatprep.subr.mxu0 0.0
    %382 = vmatpush1.xpose.msra.mxu0 0.0
    %383 = vmatprep.subr.mxu0 0.0
    %384 = vmatpush1.xpose.msra.mxu0 0.0
    %385 = vmatprep.subr.mxu0 0.0
    %386 = vmatpush1.xpose.msra.mxu0 0.0
    %387 = vmatprep.subr.mxu0 0.0
    %388 = vmatpush1.xpose.msra.mxu0 0.0
    %389 = vmatprep.subr.mxu0 0.0
    %390 = vmatpush1.xpose.msra.mxu0 0.0
    %391 = vmatprep.subr.mxu0 0.0
    %392 = vmatpush1.xpose.msra.mxu0 0.0
    %393 = vmatprep.subr.mxu0 0.0
    %394 = vmatpush1.xpose.msra.mxu0 0.0
    %395 = vmatprep.subr.mxu0 0.0
    %396 = vmatpush1.xpose.msra.mxu0 0.0
    %397 = vmatprep.subr.mxu0 0.0
    %398 = vmatpush1.xpose.msra.mxu0 0.0
    %399 = vmatprep.subr.mxu0 0.0
    %400 = vmatpush1.xpose.msra.mxu0 0.0
    %401 = vmatprep.subr.mxu0 0.0
    %402 = vmatpush1.xpose.msra.mxu0 0.0
    %403 = vmatprep.subr.mxu0 0.0
    %404 = vmatpush1.xpose.msra.mxu0 0.0
    %405 = vmatprep.mubr.f32.mxu0 0.0
    %406 = vmatmul.mubr.f32.gmra.mrb[0].mxu0 %v337
    %v407 = vpop.f32.mrb[0].mxu0
    %v408 = vadd.f32 0.0, %v407
    %v409 = vpop.f32.mrb[0].mxu0
    %410 = vdwg.mxu0
    %v411 = vmul.f32 %v331, 0.17677669
    %v412 = vmul.f32 %v408, 0.17677669
    %v413 = vld [vmem:[%s2] sm:$0x1]
    %v414 = vld [vmem:[%s2 + $0x1] sm:$0x1]
    %v417 = vlaneseq
    %v418 = vshrl.u32 %v417, 7
    %v419 = vsub.s32 0, %v418
    %v420 = vrot.slane %v413, %v419
    %v421 = vlaneseq
    %v422 = vshrl.u32 %v421, 7
    %v423 = vsub.s32 0, %v422
    %v424 = vrot.slane %v414, %v423
    %v427 = vadd.f32 %v411, %v420
    %v428 = vadd.f32 %v412, %v424
    %vm429 = vcmask 64512
    %v430 = vsel %vm429, %v427, -inf
    %431 = vmax.xlane.f32.xlu0 %v430
    %v432 = vpop.xlane.xlu0 %431
    %v433 = vsel %vm429, %v428, -inf
    %434 = vmax.xlane.f32.xlu0 %v433
    %v435 = vpop.xlane.xlu0 %434
    %v436 = vsub.f32 %v427, %v432
    %v437 = vsub.f32 %v428, %v435
    %v438 = vmul.f32 %v436, 1.442695
    %v439 = vpow.pop %v438
    %v440 = vmul.f32 %v437, 1.442695
    %v441 = vpow.pop %v440
    %v442 = vsel %vm429, %v439, 0.0
    %443 = vadd.xlane.f32.xlu0 %v442
    %v444 = vpop.xlane.xlu0 %443
    %v445 = vsel %vm429, %v441, 0.0
    %446 = vadd.xlane.f32.xlu0 %v445
    %v447 = vpop.xlane.xlu0 %446
    %v448 = vrcp.pop %v444
    %v449 = vrcp.pop %v447
    %v450 = vmul.f32 %v439, %v448
    %v451 = vmul.f32 %v441, %v449
    %452 = vrot.lane.b32.xlu0 %v249, 64
    %v453 = vpop.permute.xlu0 %452
    %v456 = vsel %vm429, %v450, 0
    %458 = vmatprep.subr.mxu0 0.0
    %459 = vmatpush1.msra.mxu0 %v453
    %460 = vmatprep.subr.mxu0 0.0
    %461 = vmatpush1.msra.mxu0 0.0
    %462 = vmatprep.subr.mxu0 0.0
    %463 = vmatpush1.msra.mxu0 0.0
    %464 = vmatprep.subr.mxu0 0.0
    %465 = vmatpush1.msra.mxu0 0.0
    %466 = vmatprep.subr.mxu0 0.0
    %467 = vmatpush1.msra.mxu0 0.0
    %468 = vmatprep.subr.mxu0 0.0
    %469 = vmatpush1.msra.mxu0 0.0
    %470 = vmatprep.subr.mxu0 0.0
    %471 = vmatpush1.msra.mxu0 0.0
    %472 = vmatprep.subr.mxu0 0.0
    %473 = vmatpush1.msra.mxu0 0.0
    %474 = vmatprep.subr.mxu0 0.0
    %475 = vmatpush1.msra.mxu0 0.0
    %476 = vmatprep.subr.mxu0 0.0
    %477 = vmatpush1.msra.mxu0 0.0
    %478 = vmatprep.subr.mxu0 0.0
    %479 = vmatpush1.msra.mxu0 0.0
    %480 = vmatprep.subr.mxu0 0.0
    %481 = vmatpush1.msra.mxu0 0.0
    %482 = vmatprep.subr.mxu0 0.0
    %483 = vmatpush1.msra.mxu0 0.0
    %484 = vmatprep.subr.mxu0 0.0
    %485 = vmatpush1.msra.mxu0 0.0
    %486 = vmatprep.subr.mxu0 0.0
    %487 = vmatpush1.msra.mxu0 0.0
    %488 = vmatprep.subr.mxu0 0.0
    %489 = vmatpush1.msra.mxu0 0.0
    %490 = vmatprep.subr.mxu0 0.0
    %491 = vmatpush1.msra.mxu0 0.0
    %492 = vmatprep.subr.mxu0 0.0
    %493 = vmatpush1.msra.mxu0 0.0
    %494 = vmatprep.subr.mxu0 0.0
    %495 = vmatpush1.msra.mxu0 0.0
    %496 = vmatprep.subr.mxu0 0.0
    %497 = vmatpush1.msra.mxu0 0.0
    %498 = vmatprep.subr.mxu0 0.0
    %499 = vmatpush1.msra.mxu0 0.0
    %500 = vmatprep.subr.mxu0 0.0
    %501 = vmatpush1.msra.mxu0 0.0
    %502 = vmatprep.subr.mxu0 0.0
    %503 = vmatpush1.msra.mxu0 0.0
    %504 = vmatprep.subr.mxu0 0.0
    %505 = vmatpush1.msra.mxu0 0.0
    %506 = vmatprep.subr.mxu0 0.0
    %507 = vmatpush1.msra.mxu0 0.0
    %508 = vmatprep.subr.mxu0 0.0
    %509 = vmatpush1.msra.mxu0 0.0
    %510 = vmatprep.subr.mxu0 0.0
    %511 = vmatpush1.msra.mxu0 0.0
    %512 = vmatprep.subr.mxu0 0.0
    %513 = vmatpush1.msra.mxu0 0.0
    %514 = vmatprep.subr.mxu0 0.0
    %515 = vmatpush1.msra.mxu0 0.0
    %516 = vmatprep.subr.mxu0 0.0
    %517 = vmatpush1.msra.mxu0 0.0
    %518 = vmatprep.subr.mxu0 0.0
    %519 = vmatpush1.msra.mxu0 0.0
    %520 = vmatprep.subr.mxu0 0.0
    %521 = vmatpush1.msra.mxu0 0.0
    %522 = vmatprep.mubr.f32.mxu0 0.0
    %523 = vmatmul.mubr.f32.gmra.mrb[0].mxu0 %v456
    %v524 = vpop.f32.mrb[0].mxu0
    %v525 = vadd.f32 0.0, %v524
    %v526 = vpop.f32.mrb[0].mxu0
    %527 = vdwg.mxu0
    %528 = vrot.lane.b32.xlu0 %v254, 64
    %v529 = vpop.permute.xlu0 %528
    %v532 = vsel %vm429, %v451, 0
    %534 = vmatprep.subr.mxu0 0.0
    %535 = vmatpush1.msra.mxu0 %v529
    %536 = vmatprep.subr.mxu0 0.0
    %537 = vmatpush1.msra.mxu0 0.0
    %538 = vmatprep.subr.mxu0 0.0
    %539 = vmatpush1.msra.mxu0 0.0
    %540 = vmatprep.subr.mxu0 0.0
    %541 = vmatpush1.msra.mxu0 0.0
    %542 = vmatprep.subr.mxu0 0.0
    %543 = vmatpush1.msra.mxu0 0.0
    %544 = vmatprep.subr.mxu0 0.0
    %545 = vmatpush1.msra.mxu0 0.0
    %546 = vmatprep.subr.mxu0 0.0
    %547 = vmatpush1.msra.mxu0 0.0
    %548 = vmatprep.subr.mxu0 0.0
    %549 = vmatpush1.msra.mxu0 0.0
    %550 = vmatprep.subr.mxu0 0.0
    %551 = vmatpush1.msra.mxu0 0.0
    %552 = vmatprep.subr.mxu0 0.0
    %553 = vmatpush1.msra.mxu0 0.0
    %554 = vmatprep.subr.mxu0 0.0
    %555 = vmatpush1.msra.mxu0 0.0
    %556 = vmatprep.subr.mxu0 0.0
    %557 = vmatpush1.msra.mxu0 0.0
    %558 = vmatprep.subr.mxu0 0.0
    %559 = vmatpush1.msra.mxu0 0.0
    %560 = vmatprep.subr.mxu0 0.0
    %561 = vmatpush1.msra.mxu0 0.0
    %562 = vmatprep.subr.mxu0 0.0
    %563 = vmatpush1.msra.mxu0 0.0
    %564 = vmatprep.subr.mxu0 0.0
    %565 = vmatpush1.msra.mxu0 0.0
    %566 = vmatprep.subr.mxu0 0.0
    %567 = vmatpush1.msra.mxu0 0.0
    %568 = vmatprep.subr.mxu0 0.0
    %569 = vmatpush1.msra.mxu0 0.0
    %570 = vmatprep.subr.mxu0 0.0
    %571 = vmatpush1.msra.mxu0 0.0
    %572 = vmatprep.subr.mxu0 0.0
    %573 = vmatpush1.msra.mxu0 0.0
    %574 = vmatprep.subr.mxu0 0.0
    %575 = vmatpush1.msra.mxu0 0.0
    %576 = vmatprep.subr.mxu0 0.0
    %577 = vmatpush1.msra.mxu0 0.0
    %578 = vmatprep.subr.mxu0 0.0
    %579 = vmatpush1.msra.mxu0 0.0
    %580 = vmatprep.subr.mxu0 0.0
    %581 = vmatpush1.msra.mxu0 0.0
    %582 = vmatprep.subr.mxu0 0.0
    %583 = vmatpush1.msra.mxu0 0.0
    %584 = vmatprep.subr.mxu0 0.0
    %585 = vmatpush1.msra.mxu0 0.0
    %586 = vmatprep.subr.mxu0 0.0
    %587 = vmatpush1.msra.mxu0 0.0
    %588 = vmatprep.subr.mxu0 0.0
    %589 = vmatpush1.msra.mxu0 0.0
    %590 = vmatprep.subr.mxu0 0.0
    %591 = vmatpush1.msra.mxu0 0.0
    %592 = vmatprep.subr.mxu0 0.0
    %593 = vmatpush1.msra.mxu0 0.0
    %594 = vmatprep.subr.mxu0 0.0
    %595 = vmatpush1.msra.mxu0 0.0
    %596 = vmatprep.subr.mxu0 0.0
    %597 = vmatpush1.msra.mxu0 0.0
    %598 = vmatprep.mubr.f32.mxu0 0.0
    %599 = vmatmul.mubr.f32.gmra.mrb[0].mxu0 %v532
    %v600 = vpop.f32.mrb[0].mxu0
    %v601 = vadd.f32 0.0, %v600
    %v602 = vpop.f32.mrb[0].mxu0
    %603 = vdwg.mxu0
    %v604 = vld [vmem:[%s5] sm:$0xff]
    %v605 = vld [vmem:[%s5 + $0x8] sm:$0xff]
    %v606 = vld [vmem:[%s5 + $0x10] sm:$0xff]
    %v607 = vld [vmem:[%s5 + $0x18] sm:$0xff]
    %v609 = vsel %vm175, %v525, 0
    %v612 = vsel %vm175, %v601, 0
    %614 = vmatprep.subr.mxu0 0.0
    %615 = vmatpush1.msra.mxu0 %v604
    %616 = vmatprep.subr.mxu0 0.0
    %617 = vmatpush1.msra.mxu0 %v605
    %618 = vmatprep.subr.mxu0 0.0
    %619 = vmatpush1.msra.mxu0 %v606
    %620 = vmatprep.subr.mxu0 0.0
    %621 = vmatpush1.msra.mxu0 %v607
    %622 = vmatprep.subr.mxu0 0.0
    %623 = vmatpush1.msra.mxu0 0.0
    %624 = vmatprep.subr.mxu0 0.0
    %625 = vmatpush1.msra.mxu0 0.0
    %626 = vmatprep.subr.mxu0 0.0
    %627 = vmatpush1.msra.mxu0 0.0
    %628 = vmatprep.subr.mxu0 0.0
    %629 = vmatpush1.msra.mxu0 0.0
    %630 = vmatprep.subr.mxu0 0.0
    %631 = vmatpush1.msra.mxu0 0.0
    %632 = vmatprep.subr.mxu0 0.0
    %633 = vmatpush1.msra.mxu0 0.0
    %634 = vmatprep.subr.mxu0 0.0
    %635 = vmatpush1.msra.mxu0 0.0
    %636 = vmatprep.subr.mxu0 0.0
    %637 = vmatpush1.msra.mxu0 0.0
    %638 = vmatprep.subr.mxu0 0.0
    %639 = vmatpush1.msra.mxu0 0.0
    %640 = vmatprep.subr.mxu0 0.0
    %641 = vmatpush1.msra.mxu0 0.0
    %642 = vmatprep.subr.mxu0 0.0
    %643 = vmatpush1.msra.mxu0 0.0
    %644 = vmatprep.subr.mxu0 0.0
    %645 = vmatpush1.msra.mxu0 0.0
    %646 = vmatprep.subr.mxu0 0.0
    %647 = vmatpush1.msra.mxu0 0.0
    %648 = vmatprep.subr.mxu0 0.0
    %649 = vmatpush1.msra.mxu0 0.0
    %650 = vmatprep.subr.mxu0 0.0
    %651 = vmatpush1.msra.mxu0 0.0
    %652 = vmatprep.subr.mxu0 0.0
    %653 = vmatpush1.msra.mxu0 0.0
    %654 = vmatprep.subr.mxu0 0.0
    %655 = vmatpush1.msra.mxu0 0.0
    %656 = vmatprep.subr.mxu0 0.0
    %657 = vmatpush1.msra.mxu0 0.0
    %658 = vmatprep.subr.mxu0 0.0
    %659 = vmatpush1.msra.mxu0 0.0
    %660 = vmatprep.subr.mxu0 0.0
    %661 = vmatpush1.msra.mxu0 0.0
    %662 = vmatprep.subr.mxu0 0.0
    %663 = vmatpush1.msra.mxu0 0.0
    %664 = vmatprep.subr.mxu0 0.0
    %665 = vmatpush1.msra.mxu0 0.0
    %666 = vmatprep.subr.mxu0 0.0
    %667 = vmatpush1.msra.mxu0 0.0
    %668 = vmatprep.subr.mxu0 0.0
    %669 = vmatpush1.msra.mxu0 0.0
    %670 = vmatprep.subr.mxu0 0.0
    %671 = vmatpush1.msra.mxu0 0.0
    %672 = vmatprep.subr.mxu0 0.0
    %673 = vmatpush1.msra.mxu0 0.0
    %674 = vmatprep.subr.mxu0 0.0
    %675 = vmatpush1.msra.mxu0 0.0
    %676 = vmatprep.subr.mxu0 0.0
    %677 = vmatpush1.msra.mxu0 0.0
    %678 = vmatprep.mubr.f32.mxu0 0.0
    %679 = vmatmul.mubr.f32.gmra.mrb[0].mxu0 %v609
    %v680 = vpop.f32.mrb[0].mxu0
    %v681 = vadd.f32 0.0, %v680
    %v682 = vpop.f32.mrb[0].mxu0
    %683 = vmatprep.mubr.f32.mxu0 0.0
    %684 = vmatmul.mubr.f32.gmra.mrb[0].mxu0 %v612
    %v685 = vpop.f32.mrb[0].mxu0
    %v686 = vadd.f32 0.0, %v685
    %v687 = vpop.f32.mrb[0].mxu0
    %688 = vdwg.mxu0
    %v689 = vadd.f32 %v163, %v681
    %v690 = vadd.f32 %v168, %v686
    %v691 = vld [vmem:[%s10] sm:$0x1]
    %v692 = vld [vmem:[%s11] sm:$0x1]
    %v693 = vsel %vm175, %v689, 0.0
    %694 = vadd.xlane.f32.xlu0 %v693
    %v695 = vpop.xlane.xlu0 %694
    %v696 = vsel %vm175, %v690, 0.0
    %697 = vadd.xlane.f32.xlu0 %v696
    %v698 = vpop.xlane.xlu0 %697
    %v699 = vrcp.pop 32.0
    %v700 = vmul.f32 %v695, %v699
    %v701 = vmul.f32 %v698, %v699
    %v702 = vsub.f32 %v689, %v700
    %v703 = vsub.f32 %v690, %v701
    %v704 = vmul.f32 %v702, %v702
    %v705 = vmul.f32 %v703, %v703
    %v706 = vsel %vm175, %v704, 0.0
    %707 = vadd.xlane.f32.xlu0 %v706
    %v708 = vpop.xlane.xlu0 %707
    %v709 = vsel %vm175, %v705, 0.0
    %710 = vadd.xlane.f32.xlu0 %v709
    %v711 = vpop.xlane.xlu0 %710
    %v712 = vmul.f32 %v708, %v699
    %v713 = vmul.f32 %v711, %v699
    %v714 = vadd.f32 %v712, 1e-07
    %v715 = vadd.f32 %v713, 1e-07
    %v716 = vrsqrt.pop %v714
    %v717 = vrsqrt.pop %v715
    %v718 = vmul.f32 %v702, %v716
    %v719 = vmul.f32 %v703, %v717
    %v721 = vlaneseq
    %v722 = vshrl.u32 %v721, 7
    %v723 = vsub.s32 0, %v722
    %v724 = vrot.slane %v691, %v723
    %v726 = vmul.f32 %v718, %v724
    %v727 = vmul.f32 %v719, %v724
    %v729 = vlaneseq
    %v730 = vshrl.u32 %v729, 7
    %v731 = vsub.s32 0, %v730
    %v732 = vrot.slane %v692, %v731
    %v734 = vadd.f32 %v726, %v732
    %v735 = vadd.f32 %v727, %v732
    %v736 = vld [vmem:[%s6] sm:$0xff]
    %v737 = vld [vmem:[%s6 + $0x8] sm:$0xff]
    %v738 = vld [vmem:[%s6 + $0x10] sm:$0xff]
    %v739 = vld [vmem:[%s6 + $0x18] sm:$0xff]
    %v740 = vld [vmem:[%s7] sm:$0x1]
    %v742 = vlaneseq
    %v743 = vshrl.u32 %v742, 7
    %v744 = vsub.s32 0, %v743
    %v745 = vrot.slane %v740, %v744
    %v748 = vsel %vm175, %v734, 0
    %v751 = vsel %vm175, %v735, 0
    %753 = vmatprep.subr.mxu0 0.0
    %754 = vmatpush1.msra.mxu0 %v736
    %755 = vmatprep.subr.mxu0 0.0
    %756 = vmatpush1.msra.mxu0 %v737
    %757 = vmatprep.subr.mxu0 0.0
    %758 = vmatpush1.msra.mxu0 %v738
    %759 = vmatprep.subr.mxu0 0.0
    %760 = vmatpush1.msra.mxu0 %v739
    %761 = vmatprep.subr.mxu0 0.0
    %762 = vmatpush1.msra.mxu0 0.0
    %763 = vmatprep.subr.mxu0 0.0
    %764 = vmatpush1.msra.mxu0 0.0
    %765 = vmatprep.subr.mxu0 0.0
    %766 = vmatpush1.msra.mxu0 0.0
    %767 = vmatprep.subr.mxu0 0.0
    %768 = vmatpush1.msra.mxu0 0.0
    %769 = vmatprep.subr.mxu0 0.0
    %770 = vmatpush1.msra.mxu0 0.0
    %771 = vmatprep.subr.mxu0 0.0
    %772 = vmatpush1.msra.mxu0 0.0
    %773 = vmatprep.subr.mxu0 0.0
    %774 = vmatpush1.msra.mxu0 0.0
    %775 = vmatprep.subr.mxu0 0.0
    %776 = vmatpush1.msra.mxu0 0.0
    %777 = vmatprep.subr.mxu0 0.0
    %778 = vmatpush1.msra.mxu0 0.0
    %779 = vmatprep.subr.mxu0 0.0
    %780 = vmatpush1.msra.mxu0 0.0
    %781 = vmatprep.subr.mxu0 0.0
    %782 = vmatpush1.msra.mxu0 0.0
    %783 = vmatprep.subr.mxu0 0.0
    %784 = vmatpush1.msra.mxu0 0.0
    %785 = vmatprep.subr.mxu0 0.0
    %786 = vmatpush1.msra.mxu0 0.0
    %787 = vmatprep.subr.mxu0 0.0
    %788 = vmatpush1.msra.mxu0 0.0
    %789 = vmatprep.subr.mxu0 0.0
    %790 = vmatpush1.msra.mxu0 0.0
    %791 = vmatprep.subr.mxu0 0.0
    %792 = vmatpush1.msra.mxu0 0.0
    %793 = vmatprep.subr.mxu0 0.0
    %794 = vmatpush1.msra.mxu0 0.0
    %795 = vmatprep.subr.mxu0 0.0
    %796 = vmatpush1.msra.mxu0 0.0
    %797 = vmatprep.subr.mxu0 0.0
    %798 = vmatpush1.msra.mxu0 0.0
    %799 = vmatprep.subr.mxu0 0.0
    %800 = vmatpush1.msra.mxu0 0.0
    %801 = vmatprep.subr.mxu0 0.0
    %802 = vmatpush1.msra.mxu0 0.0
    %803 = vmatprep.subr.mxu0 0.0
    %804 = vmatpush1.msra.mxu0 0.0
    %805 = vmatprep.subr.mxu0 0.0
    %806 = vmatpush1.msra.mxu0 0.0
    %807 = vmatprep.subr.mxu0 0.0
    %808 = vmatpush1.msra.mxu0 0.0
    %809 = vmatprep.subr.mxu0 0.0
    %810 = vmatpush1.msra.mxu0 0.0
    %811 = vmatprep.subr.mxu0 0.0
    %812 = vmatpush1.msra.mxu0 0.0
    %813 = vmatprep.subr.mxu0 0.0
    %814 = vmatpush1.msra.mxu0 0.0
    %815 = vmatprep.subr.mxu0 0.0
    %816 = vmatpush1.msra.mxu0 0.0
    %817 = vmatprep.mubr.f32.mxu0 0.0
    %818 = vmatmul.mubr.f32.gmra.mrb[0].mxu0 %v748
    %v819 = vpop.f32.mrb[0].mxu0
    %v820 = vadd.f32 %v745, %v819
    %v821 = vpop.f32.mrb[0].mxu0
    %822 = vmatprep.mubr.f32.mxu0 0.0
    %823 = vmatmul.mubr.f32.gmra.mrb[0].mxu0 %v751
    %v824 = vpop.f32.mrb[0].mxu0
    %v825 = vadd.f32 %v745, %v824
    %v826 = vpop.f32.mrb[0].mxu0
    %827 = vdwg.mxu0
    %v828 = vmul.f32 %v820, %v820
    %v829 = vmul.f32 %v825, %v825
    %v830 = vmul.f32 %v820, %v828
    %v831 = vmul.f32 %v825, %v829
    %v832 = vmul.f32 %v830, 0.044715
    %v833 = vmul.f32 %v831, 0.044715
    %v834 = vadd.f32 %v820, %v832
    %v835 = vadd.f32 %v825, %v833
    %v836 = vmul.f32 %v834, 0.7978846
    %v837 = vmul.f32 %v835, 0.7978846
    %v838 = vtanh.pop %v836
    %v839 = vtanh.pop %v837
    %v840 = vadd.f32 %v838, 1.0
    %v841 = vadd.f32 %v839, 1.0
    %v842 = vmul.f32 %v840, 0.5
    %v843 = vmul.f32 %v841, 0.5
    %v844 = vmul.f32 %v820, %v842
    %v845 = vmul.f32 %v825, %v843
    %v846 = vld [vmem:[%s8] sm:$0xff]
    %v847 = vld [vmem:[%s8 + $0x8] sm:$0xff]
    %v848 = vld [vmem:[%s8 + $0x10] sm:$0xff]
    %v849 = vld [vmem:[%s8 + $0x18] sm:$0xff]
    %v850 = vld [vmem:[%s8 + $0x20] sm:$0xff]
    %v851 = vld [vmem:[%s8 + $0x28] sm:$0xff]
    %v852 = vld [vmem:[%s8 + $0x30] sm:$0xff]
    %v853 = vld [vmem:[%s8 + $0x38] sm:$0xff]
    %v854 = vld [vmem:[%s9] sm:$0x1]
    %v856 = vlaneseq
    %v857 = vshrl.u32 %v856, 7
    %v858 = vsub.s32 0, %v857
    %v859 = vrot.slane %v854, %v858
    %vm861 = vcmask 523264
    %v863 = vsel %vm861, %v844, 0
    %v866 = vsel %vm861, %v845, 0
    %868 = vmatprep.subr.mxu0 0.0
    %869 = vmatpush1.msra.mxu0 %v846
    %870 = vmatprep.subr.mxu0 0.0
    %871 = vmatpush1.msra.mxu0 %v847
    %872 = vmatprep.subr.mxu0 0.0
    %873 = vmatpush1.msra.mxu0 %v848
    %874 = vmatprep.subr.mxu0 0.0
    %875 = vmatpush1.msra.mxu0 %v849
    %876 = vmatprep.subr.mxu0 0.0
    %877 = vmatpush1.msra.mxu0 %v850
    %878 = vmatprep.subr.mxu0 0.0
    %879 = vmatpush1.msra.mxu0 %v851
    %880 = vmatprep.subr.mxu0 0.0
    %881 = vmatpush1.msra.mxu0 %v852
    %882 = vmatprep.subr.mxu0 0.0
    %883 = vmatpush1.msra.mxu0 %v853
    %884 = vmatprep.subr.mxu0 0.0
    %885 = vmatpush1.msra.mxu0 0.0
    %886 = vmatprep.subr.mxu0 0.0
    %887 = vmatpush1.msra.mxu0 0.0
    %888 = vmatprep.subr.mxu0 0.0
    %889 = vmatpush1.msra.mxu0 0.0
    %890 = vmatprep.subr.mxu0 0.0
    %891 = vmatpush1.msra.mxu0 0.0
    %892 = vmatprep.subr.mxu0 0.0
    %893 = vmatpush1.msra.mxu0 0.0
    %894 = vmatprep.subr.mxu0 0.0
    %895 = vmatpush1.msra.mxu0 0.0
    %896 = vmatprep.subr.mxu0 0.0
    %897 = vmatpush1.msra.mxu0 0.0
    %898 = vmatprep.subr.mxu0 0.0
    %899 = vmatpush1.msra.mxu0 0.0
    %900 = vmatprep.subr.mxu0 0.0
    %901 = vmatpush1.msra.mxu0 0.0
    %902 = vmatprep.subr.mxu0 0.0
    %903 = vmatpush1.msra.mxu0 0.0
    %904 = vmatprep.subr.mxu0 0.0
    %905 = vmatpush1.msra.mxu0 0.0
    %906 = vmatprep.subr.mxu0 0.0
    %907 = vmatpush1.msra.mxu0 0.0
    %908 = vmatprep.subr.mxu0 0.0
    %909 = vmatpush1.msra.mxu0 0.0
    %910 = vmatprep.subr.mxu0 0.0
    %911 = vmatpush1.msra.mxu0 0.0
    %912 = vmatprep.subr.mxu0 0.0
    %913 = vmatpush1.msra.mxu0 0.0
    %914 = vmatprep.subr.mxu0 0.0
    %915 = vmatpush1.msra.mxu0 0.0
    %916 = vmatprep.subr.mxu0 0.0
    %917 = vmatpush1.msra.mxu0 0.0
    %918 = vmatprep.subr.mxu0 0.0
    %919 = vmatpush1.msra.mxu0 0.0
    %920 = vmatprep.subr.mxu0 0.0
    %921 = vmatpush1.msra.mxu0 0.0
    %922 = vmatprep.subr.mxu0 0.0
    %923 = vmatpush1.msra.mxu0 0.0
    %924 = vmatprep.subr.mxu0 0.0
    %925 = vmatpush1.msra.mxu0 0.0
    %926 = vmatprep.subr.mxu0 0.0
    %927 = vmatpush1.msra.mxu0 0.0
    %928 = vmatprep.subr.mxu0 0.0
    %929 = vmatpush1.msra.mxu0 0.0
    %930 = vmatprep.subr.mxu0 0.0
    %931 = vmatpush1.msra.mxu0 0.0
    %932 = vmatprep.mubr.f32.mxu0 0.0
    %933 = vmatmul.mubr.f32.gmra.mrb[0].mxu0 %v863
    %v934 = vpop.f32.mrb[0].mxu0
    %v935 = vadd.f32 %v859, %v934
    %v936 = vpop.f32.mrb[0].mxu0
    %937 = vmatprep.mubr.f32.mxu0 0.0
    %938 = vmatmul.mubr.f32.gmra.mrb[0].mxu0 %v866
    %v939 = vpop.f32.mrb[0].mxu0
    %v940 = vadd.f32 %v859, %v939
    %v941 = vpop.f32.mrb[0].mxu0
    %942 = vdwg.mxu0
    %v943 = vadd.f32 %v734, %v935
    %v944 = vadd.f32 %v735, %v940
    %v945 = vld [vmem:[%s12] sm:$0x1]
    %v946 = vld [vmem:[%s13] sm:$0x1]
    %v947 = vsel %vm175, %v943, 0.0
    %948 = vadd.xlane.f32.xlu0 %v947
    %v949 = vpop.xlane.xlu0 %948
    %v950 = vsel %vm175, %v944, 0.0
    %951 = vadd.xlane.f32.xlu0 %v950
    %v952 = vpop.xlane.xlu0 %951
    %v953 = vmul.f32 %v949, %v699
    %v954 = vmul.f32 %v952, %v699
    %v955 = vsub.f32 %v943, %v953
    %v956 = vsub.f32 %v944, %v954
    %v957 = vmul.f32 %v955, %v955
    %v958 = vmul.f32 %v956, %v956
    %v959 = vsel %vm175, %v957, 0.0
    %960 = vadd.xlane.f32.xlu0 %v959
    %v961 = vpop.xlane.xlu0 %960
    %v962 = vsel %vm175, %v958, 0.0
    %963 = vadd.xlane.f32.xlu0 %v962
    %v964 = vpop.xlane.xlu0 %963
    %v965 = vmul.f32 %v961, %v699
    %v966 = vmul.f32 %v964, %v699
    %v967 = vadd.f32 %v965, 1e-07
    %v968 = vadd.f32 %v966, 1e-07
    %v969 = vrsqrt.pop %v967
    %v970 = vrsqrt.pop %v968
    %v971 = vmul.f32 %v955, %v969
    %v972 = vmul.f32 %v956, %v970
    %v974 = vlaneseq
    %v975 = vshrl.u32 %v974, 7
    %v976 = vsub.s32 0, %v975
    %v977 = vrot.slane %v945, %v976
    %v979 = vmul.f32 %v971, %v977
    %v980 = vmul.f32 %v972, %v977
    %v982 = vlaneseq
    %v983 = vshrl.u32 %v982, 7
    %v984 = vsub.s32 0, %v983
    %v985 = vrot.slane %v946, %v984
    %v987 = vadd.f32 %v979, %v985
    %v988 = vadd.f32 %v980, %v985
    %v989 = vld [vmem:[%s14] sm:$0xff]
    %v990 = vld [vmem:[%s14 + $0x8] sm:$0xff]
    %v991 = vld [vmem:[%s14 + $0x10] sm:$0xff]
    %v992 = vld [vmem:[%s14 + $0x18] sm:$0xff]
    %v993 = vld [vmem:[%s15] sm:$0x1]
    %v995 = vlaneseq
    %v996 = vshrl.u32 %v995, 7
    %v997 = vsub.s32 0, %v996
    %v998 = vrot.slane %v993, %v997
    %v1001 = vsel %vm175, %v987, 0
    %v1004 = vsel %vm175, %v988, 0
    %1006 = vmatprep.subr.mxu0 0.0
    %1007 = vmatpush1.msra.mxu0 %v989
    %1008 = vmatprep.subr.mxu0 0.0
    %1009 = vmatpush1.msra.mxu0 %v990
    %1010 = vmatprep.subr.mxu0 0.0
    %1011 = vmatpush1.msra.mxu0 %v991
    %1012 = vmatprep.subr.mxu0 0.0
    %1013 = vmatpush1.msra.mxu0 %v992
    %1014 = vmatprep.subr.mxu0 0.0
    %1015 = vmatpush1.msra.mxu0 0.0
    %1016 = vmatprep.subr.mxu0 0.0
    %1017 = vmatpush1.msra.mxu0 0.0
    %1018 = vmatprep.subr.mxu0 0.0
    %1019 = vmatpush1.msra.mxu0 0.0
    %1020 = vmatprep.subr.mxu0 0.0
    %1021 = vmatpush1.msra.mxu0 0.0
    %1022 = vmatprep.subr.mxu0 0.0
    %1023 = vmatpush1.msra.mxu0 0.0
    %1024 = vmatprep.subr.mxu0 0.0
    %1025 = vmatpush1.msra.mxu0 0.0
    %1026 = vmatprep.subr.mxu0 0.0
    %1027 = vmatpush1.msra.mxu0 0.0
    %1028 = vmatprep.subr.mxu0 0.0
    %1029 = vmatpush1.msra.mxu0 0.0
    %1030 = vmatprep.subr.mxu0 0.0
    %1031 = vmatpush1.msra.mxu0 0.0
    %1032 = vmatprep.subr.mxu0 0.0
    %1033 = vmatpush1.msra.mxu0 0.0
    %1034 = vmatprep.subr.mxu0 0.0
    %1035 = vmatpush1.msra.mxu0 0.0
    %1036 = vmatprep.subr.mxu0 0.0
    %1037 = vmatpush1.msra.mxu0 0.0
    %1038 = vmatprep.subr.mxu0 0.0
    %1039 = vmatpush1.msra.mxu0 0.0
    %1040 = vmatprep.subr.mxu0 0.0
    %1041 = vmatpush1.msra.mxu0 0.0
    %1042 = vmatprep.subr.mxu0 0.0
    %1043 = vmatpush1.msra.mxu0 0.0
    %1044 = vmatprep.subr.mxu0 0.0
    %1045 = vmatpush1.msra.mxu0 0.0
    %1046 = vmatprep.subr.mxu0 0.0
    %1047 = vmatpush1.msra.mxu0 0.0
    %1048 = vmatprep.subr.mxu0 0.0
    %1049 = vmatpush1.msra.mxu0 0.0
    %1050 = vmatprep.subr.mxu0 0.0
    %1051 = vmatpush1.msra.mxu0 0.0
    %1052 = vmatprep.subr.mxu0 0.0
    %1053 = vmatpush1.msra.mxu0 0.0
    %1054 = vmatprep.subr.mxu0 0.0
    %1055 = vmatpush1.msra.mxu0 0.0
    %1056 = vmatprep.subr.mxu0 0.0
    %1057 = vmatpush1.msra.mxu0 0.0
    %1058 = vmatprep.subr.mxu0 0.0
    %1059 = vmatpush1.msra.mxu0 0.0
    %1060 = vmatprep.subr.mxu0 0.0
    %1061 = vmatpush1.msra.mxu0 0.0
    %1062 = vmatprep.subr.mxu0 0.0
    %1063 = vmatpush1.msra.mxu0 0.0
    %1064 = vmatprep.subr.mxu0 0.0
    %1065 = vmatpush1.msra.mxu0 0.0
    %1066 = vmatprep.subr.mxu0 0.0
    %1067 = vmatpush1.msra.mxu0 0.0
    %1068 = vmatprep.subr.mxu0 0.0
    %1069 = vmatpush1.msra.mxu0 0.0
    %1070 = vmatprep.mubr.f32.mxu0 0.0
    %1071 = vmatmul.mubr.f32.gmra.mrb[0].mxu0 %v1001
    %v1072 = vpop.f32.mrb[0].mxu0
    %v1073 = vadd.f32 %v998, %v1072
    %v1074 = vpop.f32.mrb[0].mxu0
    %1075 = vmatprep.mubr.f32.mxu0 0.0
    %1076 = vmatmul.mubr.f32.gmra.mrb[0].mxu0 %v1004
    %v1077 = vpop.f32.mrb[0].mxu0
    %v1078 = vadd.f32 %v998, %v1077
    %v1079 = vpop.f32.mrb[0].mxu0
    %1080 = vdwg.mxu0
    %vm1081 = vcmask 15360
    %1082 = vst.msk [vmem:[%s16] sm:$0xff] %vm1081, %v1073
    %1083 = vst.msk [vmem:[%s16 + $0x8] sm:$0xff] %vm1081, %v1078
    %v1084 = vld [vmem:[%s1] sm:$0x1]
    %v1085 = vld [vmem:[%s1 + $0x1] sm:$0x1]
    %vm1086 = vcmp.gt.s32.totalorder %v1084, 0
    %v1087 = vsel %vm1086, %v1084, 0
    %vm1088 = vcmp.gt.s32.totalorder %v1085, 0
    %v1089 = vsel %vm1088, %v1085, 0
    %vm1090 = vcmp.lt.s32.totalorder %v1087, 8
    %v1091 = vsel %vm1090, %v1087, 8
    %vm1092 = vcmp.lt.s32.totalorder %v1089, 8
    %v1093 = vsel %vm1092, %v1089, 8
    %v1094 = vsel %vm1081, %v1073, -inf
    %v1095 = vrot.slane %v1094, 4
    %v1096 = vmax.f32 %v1094, %v1095
    %v1097 = vrot.slane %v1096, 2
    %v1098 = vmax.f32 %v1096, %v1097
    %v1099 = vrot.slane %v1098, 1
    %v1100 = vmax.f32 %v1098, %v1099
    %v1101 = vsel %vm1081, %v1078, -inf
    %v1102 = vrot.slane %v1101, 4
    %v1103 = vmax.f32 %v1101, %v1102
    %v1104 = vrot.slane %v1103, 2
    %v1105 = vmax.f32 %v1103, %v1104
    %v1106 = vrot.slane %v1105, 1
    %v1107 = vmax.f32 %v1105, %v1106
    %v1108 = vsub.f32 %v1073, %v1100
    %v1109 = vsub.f32 %v1078, %v1107
    %v1110 = vmul.f32 %v1108, 1.442695
    %v1111 = vpow.pop %v1110
    %v1112 = vmul.f32 %v1109, 1.442695
    %v1113 = vpow.pop %v1112
    %v1114 = vsel %vm1081, %v1111, 0.0
    %v1115 = vrot.slane %v1114, 4
    %v1116 = vadd.f32 %v1114, %v1115
    %v1117 = vrot.slane %v1116, 2
    %v1118 = vadd.f32 %v1116, %v1117
    %v1119 = vrot.slane %v1118, 1
    %v1120 = vadd.f32 %v1118, %v1119
    %v1121 = vsel %vm1081, %v1113, 0.0
    %v1122 = vrot.slane %v1121, 4
    %v1123 = vadd.f32 %v1121, %v1122
    %v1124 = vrot.slane %v1123, 2
    %v1125 = vadd.f32 %v1123, %v1124
    %v1126 = vrot.slane %v1125, 1
    %v1127 = vadd.f32 %v1125, %v1126
    %v1128 = vlog2.pop %v1120
    %v1129 = vmul.f32 %v1128, 0.6931472
    %v1130 = vlog2.pop %v1127
    %v1131 = vmul.f32 %v1130, 0.6931472
    %v1132 = vadd.f32 %v1100, %v1129
    %v1133 = vadd.f32 %v1107, %v1131
    %v1134 = vlaneseq
    %v1135 = vshrl.u32 %v1134, 7
    %v1136 = vlaneseq
    %v1137 = vshrl.u32 %v1136, 7
    %v1138 = vsub.s32 0, %v1137
    %v1139 = vrot.slane %v1091, %v1138
    %v1140 = vlaneseq
    %v1141 = vshrl.u32 %v1140, 7
    %v1142 = vsub.s32 0, %v1141
    %v1143 = vrot.slane %v1093, %v1142
    %vm1144 = vcmp.eq.s32.totalorder %v1135, %v1139
    %vm1145 = vcmp.eq.s32.totalorder %v1135, %v1143
    %v1146 = vsel %vm1144, %v1073, 0.0
    %v1147 = vsel %vm1145, %v1078, 0.0
    %v1148 = vsel %vm1081, %v1146, 0.0
    %v1149 = vrot.slane %v1148, 4
    %v1150 = vadd.f32 %v1148, %v1149
    %v1151 = vrot.slane %v1150, 2
    %v1152 = vadd.f32 %v1150, %v1151
    %v1153 = vrot.slane %v1152, 1
    %v1154 = vadd.f32 %v1152, %v1153
    %v1155 = vsel %vm1081, %v1147, 0.0
    %v1156 = vrot.slane %v1155, 4
    %v1157 = vadd.f32 %v1155, %v1156
    %v1158 = vrot.slane %v1157, 2
    %v1159 = vadd.f32 %v1157, %v1158
    %v1160 = vrot.slane %v1159, 1
    %v1161 = vadd.f32 %v1159, %v1160
    %vm1162 = vcmp.ne.s32.totalorder %v1091, 8
    %vm1163 = vcmp.ne.s32.totalorder %v1093, 8
    %v1164 = vsel %vm1162, 1, 0
    %v1165 = vsel %vm1163, 1, 0
    %v1166 = vcvt.s32.f32 %v1164
    %v1167 = vcvt.s32.f32 %v1165
    %v1168 = vsub.f32 %v1132, %v1154
    %v1169 = vsub.f32 %v1133, %v1161
    %v1170 = vmul.f32 %v1168, %v1166
    %v1171 = vmul.f32 %v1169, %v1167
    %vm1172 = vcmask 8192
    %v1173 = vsel %vm1172, %v1170, 0.0
    %v1174 = vsel %vm1172, %v1171, 0.0
    %v1175 = vadd.f32 %v1173, %v1174
    %v1176 = vsel %vm1172, %v1166, 0.0
    %v1177 = vsel %vm1172, %v1167, 0.0
    %v1178 = vadd.f32 %v1176, %v1177
    %v1179 = vrcp.pop %v1178
    %v1180 = vmul.f32 %v1175, %v1179
    %v1181 = vsel %vm1172, %v1180, 0.0
    %1182 = vadd.xlane.f32.xlu0 %v1181
    %v1183 = vpop.xlane.xlu0 %1182
    %v1184 = vmul.f32 %v1183, 0.5
    %vm1185 = vcmask 0
    %1186 = vst.msk [vmem:[#allocation2] sm:$0x1] %vm1185, %v1184
    // Predicated region
    $region66: #{tpu_custom_call.1} parent=1 // pred_check
      _
    $region67: #{tpu_custom_call.1} parent=1 // pred_check_branch
      %1188 = sbr.rel (0) target = $region69
    $region68: #{tpu_custom_call.1} parent=1 // pred_region
      _
    $region69: #{tpu_custom_call.1} parent=1 // pred_fallthru
      _
    // Predicated region
    $region70: #{tpu_custom_call.1} parent=1 // pred_check
      _
    $region71: #{tpu_custom_call.1} parent=1 // pred_check_branch
      %1190 = sbr.rel (0) target = $region73
    $region72: #{tpu_custom_call.1} parent=1 // pred_region
      %s1192 = ssub.s32 16, 16
      %1193 = vsyncadd [#allocation3], %s1192
      %s1195 = sshll.u32 [#allocation2], 4
      %s1196 = int_to_ptr.vmem [resolvable:$true] %s1195
      %1198 = dma.vmem_to_hbm [thread:$0]  %s1196, 16, %s17, [#allocation3]
    $region73: #{tpu_custom_call.1} parent=1 // pred_fallthru
      _
    // Predicated region
    $region74: #{tpu_custom_call.1} parent=1 // pred_check
      _
    $region75: #{tpu_custom_call.1} parent=1 // pred_check_branch
      %1200 = sbr.rel (0) target = $region77
    $region76: #{tpu_custom_call.1} parent=1 // pred_region
      _
    $region77: #{tpu_custom_call.1} parent=1 // pred_fallthru
      _
    // Predicated region
    $region78: #{tpu_custom_call.1} parent=1 // pred_check
      _
    $region79: #{tpu_custom_call.1} parent=1 // pred_check_branch
      %1202 = sbr.rel (0) target = $region81
    $region80: #{tpu_custom_call.1} parent=1 // pred_region
      %1203 = dma.done [#allocation3], 16
    $region81: #{tpu_custom_call.1} parent=1 // pred_fallthru
      _
    %1204 = vsyncpa [#allocation3], 1

</llo_original>
